<compile_context>
chip_gen: v7x
topology: tpu7x:2x2x1
jax: 0.10.0
libtpu: 0.0.40
codegen_flags: <defaults>
</compile_context>

<pallas_src>
import functools

import jax
import jax.numpy as jnp
import numpy as np
from jax.experimental import pallas as pl
from jax.experimental.pallas import tpu as pltpu

GP = 128           # padded per-gate lane width (3H = 96 -> 128)
G4 = 4 * GP        # 512 gate lanes, gate-type-major [ I | F | O | G ]


def _round_up(x, m):
    return (x + m - 1) // m * m


def _packed_layout(din):
    """Row offsets inside the single packed weight buffer (all multiples of 8)."""
    row_win = 0
    row_whh = _round_up(din, 8)
    row_b = row_whh + GP
    row_wfc = _round_up(row_b + 1, 8)
    row_bfc = _round_up(row_wfc + 1, 8)
    total = _round_up(row_bfc + 1, 8)
    return row_win, row_whh, row_b, row_wfc, row_bfc, total


def _sigmoid(x):
    # Exact identity; keeps the activation on the EUP tanh path + trivial VPU ops.
    return 0.5 * jnp.tanh(0.5 * x) + 0.5


# ----------------------------------------------------------------------------
# Fused Pallas kernel: block-diagonal 3-LSTM recurrence + FC + sigmoid
# ----------------------------------------------------------------------------
def _fused_kernel(x_ref, w_ref, out_ref, *, seq_len, din,
                  row_whh, row_b, row_wfc, row_bfc):
    G3 = 3 * GP

    # Prologue: whole-sequence input projection in one MXU pass, bias folded in.
    xg = (jnp.dot(x_ref[...], w_ref[0:din, :],
                  preferred_element_type=jnp.float32)
          + w_ref[row_b:row_b + 1, :])                       # (T, 512)

    w_hh = w_ref[row_whh:row_whh + GP, :]                    # (128, 512)

    h = jnp.zeros((1, GP), jnp.float32)
    c = jnp.zeros((1, GP), jnp.float32)

    # T is tiny and static: fully unrolled recurrence, static row slices.
    for t in range(seq_len):
        g = xg[t:t + 1, :] + jnp.dot(h, w_hh,
                                     preferred_element_type=jnp.float32)
        ifo = _sigmoid(g[:, 0:G3])                           # one EUP stream, 3 vregs
        i = ifo[:, 0:GP]
        f = ifo[:, GP:2 * GP]
        o = ifo[:, 2 * GP:G3]
        c = f * c + i * jnp.tanh(g[:, G3:G4])
        h = o * jnp.tanh(c)

    # FC (output width 1) as VPU multiply + lane reduction, then sigmoid.
    w_fc = w_ref[row_wfc:row_wfc + 1, 0:GP]                  # (1, 128), pad lanes zero
    b_fc = w_ref[row_bfc:row_bfc + 1, 0:1]                   # (1, 1)
    out_ref[...] = _sigmoid(jnp.sum(h * w_fc, axis=-1, keepdims=True) + b_fc)


# ----------------------------------------------------------------------------
# One-time parameter packing (off the per-call critical path)
# ----------------------------------------------------------------------------
def prepare_fused_params(params, hidden):
    """Pack PyTorch-layout LSTM/FC params into ONE padded, gate-type-major buffer."""
    H = hidden
    dims = [np.asarray(params[n][0], np.float32).shape[1]
            for n in ("text", "audio", "video")]
    din = sum(dims)
    row_win, row_whh, row_b, row_wfc, row_bfc, total = _packed_layout(din)

    # torch gate order along 4H axis is [i, f, g, o]; target blocks are [I, F, O, G].
    tmap = {0: 0, 1: 1, 2: 3, 3: 2}

    def place_cols(w_t, m):
        # w_t: (rows, 4H), gates along columns in torch order.
        out = np.zeros((w_t.shape[0], G4), np.float32)
        for tg, dst in tmap.items():
            out[:, dst * GP + m * H: dst * GP + (m + 1) * H] = \
                w_t[:, tg * H:(tg + 1) * H]
        return out

    buf = np.zeros((total, G4), np.float32)
    r = 0
    for m, name in enumerate(("text", "audio", "video")):
        w_ih, w_hh, b_ih, b_hh = (np.asarray(a, np.float32) for a in params[name])
        d = w_ih.shape[1]
        buf[row_win + r: row_win + r + d, :] = place_cols(w_ih.T, m)          # input map
        buf[row_whh + m * H: row_whh + (m + 1) * H, :] = place_cols(w_hh.T, m)  # block-diag
        buf[row_b:row_b + 1, :] += place_cols((b_ih + b_hh).reshape(1, 4 * H), m)
        r += d

    w_fc, b_fc = params["fc"]
    w_fc = np.asarray(w_fc, np.float32)          # (1, 3H)
    b_fc = np.asarray(b_fc, np.float32)          # (1,)
    buf[row_wfc, 0:3 * H] = w_fc[0]              # matches h lane layout [text|audio|video]
    buf[row_bfc, 0] = b_fc[0]
    return jnp.asarray(buf)


# ----------------------------------------------------------------------------
# Forward: a single pallas_call
# ----------------------------------------------------------------------------
@jax.jit
def multimodal_lstm_forward(packed_w, x1, x2, x3):
    x = jnp.concatenate([x1, x2, x3], axis=1).astype(jnp.float32)   # (T, D1+D2+D3)
    seq_len, din = x.shape
    _, row_whh, row_b, row_wfc, row_bfc, total = _packed_layout(din)
    kernel = functools.partial(
        _fused_kernel, seq_len=seq_len, din=din,
        row_whh=row_whh, row_b=row_b, row_wfc=row_wfc, row_bfc=row_bfc)
    return pl.pallas_call(
        kernel,
        out_shape=jax.ShapeDtypeStruct((1, 1), jnp.float32),
        in_specs=[pl.BlockSpec(memory_space=pltpu.MemorySpace.VMEM),
                  pl.BlockSpec(memory_space=pltpu.MemorySpace.VMEM)],
        out_specs=pl.BlockSpec(memory_space=pltpu.MemorySpace.VMEM),
    )(x, packed_w)


# ----------------------------------------------------------------------------
# Pure-JAX reference (original, un-fused layout) for a sanity check
# ----------------------------------------------------------------------------
def _ref_lstm_final_hidden(x, w_ih, w_hh, b_ih, b_hh):
    H = w_hh.shape[1]
    h = jnp.zeros((H,), jnp.float32)
    c = jnp.zeros((H,), jnp.float32)
    for t in range(x.shape[0]):
        g = w_ih @ x[t] + b_ih + w_hh @ h + b_hh
        i = jax.nn.sigmoid(g[0:H])
        f = jax.nn.sigmoid(g[H:2 * H])
        gg = jnp.tanh(g[2 * H:3 * H])
        o = jax.nn.sigmoid(g[3 * H:4 * H])
        c = f * c + i * gg
        h = o * jnp.tanh(c)
    return h


def _ref_forward(params, x1, x2, x3):
    h1 = _ref_lstm_final_hidden(x1, *params["text"])
    h2 = _ref_lstm_final_hidden(x2, *params["audio"])
    h3 = _ref_lstm_final_hidden(x3, *params["video"])
    combined = jnp.concatenate([h1, h2, h3], axis=0)
    w_fc, b_fc = params["fc"]
    return jax.nn.sigmoid(w_fc @ combined + b_fc)[0]


# ----------------------------------------------------------------------------
# Deterministic parameter init (PyTorch-style uniform(-1/sqrt(H), 1/sqrt(H)))
# ----------------------------------------------------------------------------
def init_params(key, text_modal, audio_modal, video_modal, hidden, output):
    def lstm_params(k, d_in):
        s = 1.0 / np.sqrt(hidden)
        k1, k2, k3, k4 = jax.random.split(k, 4)
        return (jax.random.uniform(k1, (4 * hidden, d_in), jnp.float32, -s, s),
                jax.random.uniform(k2, (4 * hidden, hidden), jnp.float32, -s, s),
                jax.random.uniform(k3, (4 * hidden,), jnp.float32, -s, s),
                jax.random.uniform(k4, (4 * hidden,), jnp.float32, -s, s))

    kt, ka, kv, kf1, kf2 = jax.random.split(key, 5)
    s_fc = 1.0 / np.sqrt(hidden * 3)
    return {
        "text": lstm_params(kt, text_modal),
        "audio": lstm_params(ka, audio_modal),
        "video": lstm_params(kv, video_modal),
        "fc": (
            jax.random.uniform(kf1, (output, hidden * 3), jnp.float32, -s_fc, s_fc),
            jax.random.uniform(kf2, (output,), jnp.float32, -s_fc, s_fc),
        ),
    }


# ----------------------------------------------------------------------------
if __name__ == "__main__":
    TEXT_MODAL, AUDIO_MODAL, VIDEO_MODAL = 16, 8, 24
    HIDDEN, OUTPUT = 32, 1
    SEQ = 8

    key = jax.random.PRNGKey(0)
    kp, k1, k2, k3 = jax.random.split(key, 4)
    params = init_params(kp, TEXT_MODAL, AUDIO_MODAL, VIDEO_MODAL, HIDDEN, OUTPUT)

    # One-time weight re-layout (off the per-call critical path).
    packed_w = prepare_fused_params(params, HIDDEN)

    x1 = jax.random.normal(k1, (SEQ, TEXT_MODAL), jnp.float32)
    x2 = jax.random.normal(k2, (SEQ, AUDIO_MODAL), jnp.float32)
    x3 = jax.random.normal(k3, (SEQ, VIDEO_MODAL), jnp.float32)

    out = multimodal_lstm_forward(packed_w, x1, x2, x3)
    out = jax.block_until_ready(out)
    result = float(out[0, 0])  # mirrors `float(output)` in the PyTorch module

    ref = float(jax.block_until_ready(_ref_forward(params, x1, x2, x3)))
    assert np.isfinite(result) and abs(result - ref) < 1e-4, (result, ref)

    print("KERNEL_OK")
</pallas_src>

<mosaic_0001>
module attributes {stable_mosaic.version = 11 : i64} {
  func.func @_fused_kernel(%arg0: memref<8x48xf32, #tpu.memory_space<vmem>>, %arg1: memref<200x512xf32, #tpu.memory_space<vmem>>, %arg2: memref<1x1xf32, #tpu.memory_space<vmem>>) attributes {dimension_semantics = [], scalar_prefetch = 0 : i64, scratch_operands = 0 : i64, tpu.core_type = #tpu.core_type<tc>} {
    %c0 = arith.constant 0 : index
    %c0_0 = arith.constant 0 : index
    %0 = vector.load %arg0[%c0, %c0_0] : memref<8x48xf32, #tpu.memory_space<vmem>>, vector<8x48xf32>
    %c0_1 = arith.constant 0 : index
    %c0_2 = arith.constant 0 : index
    %1 = vector.load %arg1[%c0_1, %c0_2] : memref<200x512xf32, #tpu.memory_space<vmem>>, vector<48x512xf32>
    %cst = arith.constant dense<0.000000e+00> : vector<8x512xf32>
    %2 = tpu.matmul %0, %1, %cst {dimension_numbers = #tpu.dot_dimension_numbers<[1], [0], [0], [1], [0, 0, 1, 1], [], []>} : vector<8x48xf32>, vector<48x512xf32>, vector<8x512xf32> -> vector<8x512xf32>
    %c176 = arith.constant 176 : index
    %c0_3 = arith.constant 0 : index
    %3 = vector.load %arg1[%c176, %c0_3] : memref<200x512xf32, #tpu.memory_space<vmem>>, vector<1x512xf32>
    %4 = vector.broadcast %3 : vector<1x512xf32> to vector<8x512xf32>
    %5 = arith.addf %2, %4 : vector<8x512xf32>
    %c48 = arith.constant 48 : index
    %c0_4 = arith.constant 0 : index
    %6 = vector.load %arg1[%c48, %c0_4] : memref<200x512xf32, #tpu.memory_space<vmem>>, vector<128x512xf32>
    %cst_5 = arith.constant 0.000000e+00 : f32
    %7 = vector.broadcast %cst_5 : f32 to vector<1x128xf32>
    %cst_6 = arith.constant 0.000000e+00 : f32
    %8 = vector.broadcast %cst_6 : f32 to vector<1x128xf32>
    %9 = vector.extract_strided_slice %5 {offsets = [0, 0], sizes = [1, 512], strides = [1, 1]} : vector<8x512xf32> to vector<1x512xf32>
    %cst_7 = arith.constant dense<0.000000e+00> : vector<1x512xf32>
    %10 = tpu.matmul %7, %6, %cst_7 {dimension_numbers = #tpu.dot_dimension_numbers<[1], [0], [0], [1], [0, 0, 1, 1], [], []>} : vector<1x128xf32>, vector<128x512xf32>, vector<1x512xf32> -> vector<1x512xf32>
    %11 = arith.addf %9, %10 : vector<1x512xf32>
    %12 = vector.extract_strided_slice %11 {offsets = [0, 0], sizes = [1, 384], strides = [1, 1]} : vector<1x512xf32> to vector<1x384xf32>
    %cst_8 = arith.constant 5.000000e-01 : f32
    %13 = vector.broadcast %cst_8 : f32 to vector<1x384xf32>
    %14 = arith.mulf %13, %12 : vector<1x384xf32>
    %15 = math.tanh %14 : vector<1x384xf32>
    %cst_9 = arith.constant 5.000000e-01 : f32
    %16 = vector.broadcast %cst_9 : f32 to vector<1x384xf32>
    %17 = arith.mulf %16, %15 : vector<1x384xf32>
    %cst_10 = arith.constant 5.000000e-01 : f32
    %18 = vector.broadcast %cst_10 : f32 to vector<1x384xf32>
    %19 = arith.addf %17, %18 : vector<1x384xf32>
    %20 = vector.extract_strided_slice %19 {offsets = [0, 0], sizes = [1, 128], strides = [1, 1]} : vector<1x384xf32> to vector<1x128xf32>
    %21 = vector.extract_strided_slice %19 {offsets = [0, 128], sizes = [1, 128], strides = [1, 1]} : vector<1x384xf32> to vector<1x128xf32>
    %22 = vector.extract_strided_slice %19 {offsets = [0, 256], sizes = [1, 128], strides = [1, 1]} : vector<1x384xf32> to vector<1x128xf32>
    %23 = arith.mulf %21, %8 : vector<1x128xf32>
    %24 = vector.extract_strided_slice %11 {offsets = [0, 384], sizes = [1, 128], strides = [1, 1]} : vector<1x512xf32> to vector<1x128xf32>
    %25 = math.tanh %24 : vector<1x128xf32>
    %26 = arith.mulf %20, %25 : vector<1x128xf32>
    %27 = arith.addf %23, %26 : vector<1x128xf32>
    %28 = math.tanh %27 : vector<1x128xf32>
    %29 = arith.mulf %22, %28 : vector<1x128xf32>
    %30 = vector.extract_strided_slice %5 {offsets = [1, 0], sizes = [1, 512], strides = [1, 1]} : vector<8x512xf32> to vector<1x512xf32>
    %cst_11 = arith.constant dense<0.000000e+00> : vector<1x512xf32>
    %31 = tpu.matmul %29, %6, %cst_11 {dimension_numbers = #tpu.dot_dimension_numbers<[1], [0], [0], [1], [0, 0, 1, 1], [], []>} : vector<1x128xf32>, vector<128x512xf32>, vector<1x512xf32> -> vector<1x512xf32>
    %32 = arith.addf %30, %31 : vector<1x512xf32>
    %33 = vector.extract_strided_slice %32 {offsets = [0, 0], sizes = [1, 384], strides = [1, 1]} : vector<1x512xf32> to vector<1x384xf32>
    %cst_12 = arith.constant 5.000000e-01 : f32
    %34 = vector.broadcast %cst_12 : f32 to vector<1x384xf32>
    %35 = arith.mulf %34, %33 : vector<1x384xf32>
    %36 = math.tanh %35 : vector<1x384xf32>
    %cst_13 = arith.constant 5.000000e-01 : f32
    %37 = vector.broadcast %cst_13 : f32 to vector<1x384xf32>
    %38 = arith.mulf %37, %36 : vector<1x384xf32>
    %cst_14 = arith.constant 5.000000e-01 : f32
    %39 = vector.broadcast %cst_14 : f32 to vector<1x384xf32>
    %40 = arith.addf %38, %39 : vector<1x384xf32>
    %41 = vector.extract_strided_slice %40 {offsets = [0, 0], sizes = [1, 128], strides = [1, 1]} : vector<1x384xf32> to vector<1x128xf32>
    %42 = vector.extract_strided_slice %40 {offsets = [0, 128], sizes = [1, 128], strides = [1, 1]} : vector<1x384xf32> to vector<1x128xf32>
    %43 = vector.extract_strided_slice %40 {offsets = [0, 256], sizes = [1, 128], strides = [1, 1]} : vector<1x384xf32> to vector<1x128xf32>
    %44 = arith.mulf %42, %27 : vector<1x128xf32>
    %45 = vector.extract_strided_slice %32 {offsets = [0, 384], sizes = [1, 128], strides = [1, 1]} : vector<1x512xf32> to vector<1x128xf32>
    %46 = math.tanh %45 : vector<1x128xf32>
    %47 = arith.mulf %41, %46 : vector<1x128xf32>
    %48 = arith.addf %44, %47 : vector<1x128xf32>
    %49 = math.tanh %48 : vector<1x128xf32>
    %50 = arith.mulf %43, %49 : vector<1x128xf32>
    %51 = vector.extract_strided_slice %5 {offsets = [2, 0], sizes = [1, 512], strides = [1, 1]} : vector<8x512xf32> to vector<1x512xf32>
    %cst_15 = arith.constant dense<0.000000e+00> : vector<1x512xf32>
    %52 = tpu.matmul %50, %6, %cst_15 {dimension_numbers = #tpu.dot_dimension_numbers<[1], [0], [0], [1], [0, 0, 1, 1], [], []>} : vector<1x128xf32>, vector<128x512xf32>, vector<1x512xf32> -> vector<1x512xf32>
    %53 = arith.addf %51, %52 : vector<1x512xf32>
    %54 = vector.extract_strided_slice %53 {offsets = [0, 0], sizes = [1, 384], strides = [1, 1]} : vector<1x512xf32> to vector<1x384xf32>
    %cst_16 = arith.constant 5.000000e-01 : f32
    %55 = vector.broadcast %cst_16 : f32 to vector<1x384xf32>
    %56 = arith.mulf %55, %54 : vector<1x384xf32>
    %57 = math.tanh %56 : vector<1x384xf32>
    %cst_17 = arith.constant 5.000000e-01 : f32
    %58 = vector.broadcast %cst_17 : f32 to vector<1x384xf32>
    %59 = arith.mulf %58, %57 : vector<1x384xf32>
    %cst_18 = arith.constant 5.000000e-01 : f32
    %60 = vector.broadcast %cst_18 : f32 to vector<1x384xf32>
    %61 = arith.addf %59, %60 : vector<1x384xf32>
    %62 = vector.extract_strided_slice %61 {offsets = [0, 0], sizes = [1, 128], strides = [1, 1]} : vector<1x384xf32> to vector<1x128xf32>
    %63 = vector.extract_strided_slice %61 {offsets = [0, 128], sizes = [1, 128], strides = [1, 1]} : vector<1x384xf32> to vector<1x128xf32>
    %64 = vector.extract_strided_slice %61 {offsets = [0, 256], sizes = [1, 128], strides = [1, 1]} : vector<1x384xf32> to vector<1x128xf32>
    %65 = arith.mulf %63, %48 : vector<1x128xf32>
    %66 = vector.extract_strided_slice %53 {offsets = [0, 384], sizes = [1, 128], strides = [1, 1]} : vector<1x512xf32> to vector<1x128xf32>
    %67 = math.tanh %66 : vector<1x128xf32>
    %68 = arith.mulf %62, %67 : vector<1x128xf32>
    %69 = arith.addf %65, %68 : vector<1x128xf32>
    %70 = math.tanh %69 : vector<1x128xf32>
    %71 = arith.mulf %64, %70 : vector<1x128xf32>
    %72 = vector.extract_strided_slice %5 {offsets = [3, 0], sizes = [1, 512], strides = [1, 1]} : vector<8x512xf32> to vector<1x512xf32>
    %cst_19 = arith.constant dense<0.000000e+00> : vector<1x512xf32>
    %73 = tpu.matmul %71, %6, %cst_19 {dimension_numbers = #tpu.dot_dimension_numbers<[1], [0], [0], [1], [0, 0, 1, 1], [], []>} : vector<1x128xf32>, vector<128x512xf32>, vector<1x512xf32> -> vector<1x512xf32>
    %74 = arith.addf %72, %73 : vector<1x512xf32>
    %75 = vector.extract_strided_slice %74 {offsets = [0, 0], sizes = [1, 384], strides = [1, 1]} : vector<1x512xf32> to vector<1x384xf32>
    %cst_20 = arith.constant 5.000000e-01 : f32
    %76 = vector.broadcast %cst_20 : f32 to vector<1x384xf32>
    %77 = arith.mulf %76, %75 : vector<1x384xf32>
    %78 = math.tanh %77 : vector<1x384xf32>
    %cst_21 = arith.constant 5.000000e-01 : f32
    %79 = vector.broadcast %cst_21 : f32 to vector<1x384xf32>
    %80 = arith.mulf %79, %78 : vector<1x384xf32>
    %cst_22 = arith.constant 5.000000e-01 : f32
    %81 = vector.broadcast %cst_22 : f32 to vector<1x384xf32>
    %82 = arith.addf %80, %81 : vector<1x384xf32>
    %83 = vector.extract_strided_slice %82 {offsets = [0, 0], sizes = [1, 128], strides = [1, 1]} : vector<1x384xf32> to vector<1x128xf32>
    %84 = vector.extract_strided_slice %82 {offsets = [0, 128], sizes = [1, 128], strides = [1, 1]} : vector<1x384xf32> to vector<1x128xf32>
    %85 = vector.extract_strided_slice %82 {offsets = [0, 256], sizes = [1, 128], strides = [1, 1]} : vector<1x384xf32> to vector<1x128xf32>
    %86 = arith.mulf %84, %69 : vector<1x128xf32>
    %87 = vector.extract_strided_slice %74 {offsets = [0, 384], sizes = [1, 128], strides = [1, 1]} : vector<1x512xf32> to vector<1x128xf32>
    %88 = math.tanh %87 : vector<1x128xf32>
    %89 = arith.mulf %83, %88 : vector<1x128xf32>
    %90 = arith.addf %86, %89 : vector<1x128xf32>
    %91 = math.tanh %90 : vector<1x128xf32>
    %92 = arith.mulf %85, %91 : vector<1x128xf32>
    %93 = vector.extract_strided_slice %5 {offsets = [4, 0], sizes = [1, 512], strides = [1, 1]} : vector<8x512xf32> to vector<1x512xf32>
    %cst_23 = arith.constant dense<0.000000e+00> : vector<1x512xf32>
    %94 = tpu.matmul %92, %6, %cst_23 {dimension_numbers = #tpu.dot_dimension_numbers<[1], [0], [0], [1], [0, 0, 1, 1], [], []>} : vector<1x128xf32>, vector<128x512xf32>, vector<1x512xf32> -> vector<1x512xf32>
    %95 = arith.addf %93, %94 : vector<1x512xf32>
    %96 = vector.extract_strided_slice %95 {offsets = [0, 0], sizes = [1, 384], strides = [1, 1]} : vector<1x512xf32> to vector<1x384xf32>
    %cst_24 = arith.constant 5.000000e-01 : f32
    %97 = vector.broadcast %cst_24 : f32 to vector<1x384xf32>
    %98 = arith.mulf %97, %96 : vector<1x384xf32>
    %99 = math.tanh %98 : vector<1x384xf32>
    %cst_25 = arith.constant 5.000000e-01 : f32
    %100 = vector.broadcast %cst_25 : f32 to vector<1x384xf32>
    %101 = arith.mulf %100, %99 : vector<1x384xf32>
    %cst_26 = arith.constant 5.000000e-01 : f32
    %102 = vector.broadcast %cst_26 : f32 to vector<1x384xf32>
    %103 = arith.addf %101, %102 : vector<1x384xf32>
    %104 = vector.extract_strided_slice %103 {offsets = [0, 0], sizes = [1, 128], strides = [1, 1]} : vector<1x384xf32> to vector<1x128xf32>
    %105 = vector.extract_strided_slice %103 {offsets = [0, 128], sizes = [1, 128], strides = [1, 1]} : vector<1x384xf32> to vector<1x128xf32>
    %106 = vector.extract_strided_slice %103 {offsets = [0, 256], sizes = [1, 128], strides = [1, 1]} : vector<1x384xf32> to vector<1x128xf32>
    %107 = arith.mulf %105, %90 : vector<1x128xf32>
    %108 = vector.extract_strided_slice %95 {offsets = [0, 384], sizes = [1, 128], strides = [1, 1]} : vector<1x512xf32> to vector<1x128xf32>
    %109 = math.tanh %108 : vector<1x128xf32>
    %110 = arith.mulf %104, %109 : vector<1x128xf32>
    %111 = arith.addf %107, %110 : vector<1x128xf32>
    %112 = math.tanh %111 : vector<1x128xf32>
    %113 = arith.mulf %106, %112 : vector<1x128xf32>
    %114 = vector.extract_strided_slice %5 {offsets = [5, 0], sizes = [1, 512], strides = [1, 1]} : vector<8x512xf32> to vector<1x512xf32>
    %cst_27 = arith.constant dense<0.000000e+00> : vector<1x512xf32>
    %115 = tpu.matmul %113, %6, %cst_27 {dimension_numbers = #tpu.dot_dimension_numbers<[1], [0], [0], [1], [0, 0, 1, 1], [], []>} : vector<1x128xf32>, vector<128x512xf32>, vector<1x512xf32> -> vector<1x512xf32>
    %116 = arith.addf %114, %115 : vector<1x512xf32>
    %117 = vector.extract_strided_slice %116 {offsets = [0, 0], sizes = [1, 384], strides = [1, 1]} : vector<1x512xf32> to vector<1x384xf32>
    %cst_28 = arith.constant 5.000000e-01 : f32
    %118 = vector.broadcast %cst_28 : f32 to vector<1x384xf32>
    %119 = arith.mulf %118, %117 : vector<1x384xf32>
    %120 = math.tanh %119 : vector<1x384xf32>
    %cst_29 = arith.constant 5.000000e-01 : f32
    %121 = vector.broadcast %cst_29 : f32 to vector<1x384xf32>
    %122 = arith.mulf %121, %120 : vector<1x384xf32>
    %cst_30 = arith.constant 5.000000e-01 : f32
    %123 = vector.broadcast %cst_30 : f32 to vector<1x384xf32>
    %124 = arith.addf %122, %123 : vector<1x384xf32>
    %125 = vector.extract_strided_slice %124 {offsets = [0, 0], sizes = [1, 128], strides = [1, 1]} : vector<1x384xf32> to vector<1x128xf32>
    %126 = vector.extract_strided_slice %124 {offsets = [0, 128], sizes = [1, 128], strides = [1, 1]} : vector<1x384xf32> to vector<1x128xf32>
    %127 = vector.extract_strided_slice %124 {offsets = [0, 256], sizes = [1, 128], strides = [1, 1]} : vector<1x384xf32> to vector<1x128xf32>
    %128 = arith.mulf %126, %111 : vector<1x128xf32>
    %129 = vector.extract_strided_slice %116 {offsets = [0, 384], sizes = [1, 128], strides = [1, 1]} : vector<1x512xf32> to vector<1x128xf32>
    %130 = math.tanh %129 : vector<1x128xf32>
    %131 = arith.mulf %125, %130 : vector<1x128xf32>
    %132 = arith.addf %128, %131 : vector<1x128xf32>
    %133 = math.tanh %132 : vector<1x128xf32>
    %134 = arith.mulf %127, %133 : vector<1x128xf32>
    %135 = vector.extract_strided_slice %5 {offsets = [6, 0], sizes = [1, 512], strides = [1, 1]} : vector<8x512xf32> to vector<1x512xf32>
    %cst_31 = arith.constant dense<0.000000e+00> : vector<1x512xf32>
    %136 = tpu.matmul %134, %6, %cst_31 {dimension_numbers = #tpu.dot_dimension_numbers<[1], [0], [0], [1], [0, 0, 1, 1], [], []>} : vector<1x128xf32>, vector<128x512xf32>, vector<1x512xf32> -> vector<1x512xf32>
    %137 = arith.addf %135, %136 : vector<1x512xf32>
    %138 = vector.extract_strided_slice %137 {offsets = [0, 0], sizes = [1, 384], strides = [1, 1]} : vector<1x512xf32> to vector<1x384xf32>
    %cst_32 = arith.constant 5.000000e-01 : f32
    %139 = vector.broadcast %cst_32 : f32 to vector<1x384xf32>
    %140 = arith.mulf %139, %138 : vector<1x384xf32>
    %141 = math.tanh %140 : vector<1x384xf32>
    %cst_33 = arith.constant 5.000000e-01 : f32
    %142 = vector.broadcast %cst_33 : f32 to vector<1x384xf32>
    %143 = arith.mulf %142, %141 : vector<1x384xf32>
    %cst_34 = arith.constant 5.000000e-01 : f32
    %144 = vector.broadcast %cst_34 : f32 to vector<1x384xf32>
    %145 = arith.addf %143, %144 : vector<1x384xf32>
    %146 = vector.extract_strided_slice %145 {offsets = [0, 0], sizes = [1, 128], strides = [1, 1]} : vector<1x384xf32> to vector<1x128xf32>
    %147 = vector.extract_strided_slice %145 {offsets = [0, 128], sizes = [1, 128], strides = [1, 1]} : vector<1x384xf32> to vector<1x128xf32>
    %148 = vector.extract_strided_slice %145 {offsets = [0, 256], sizes = [1, 128], strides = [1, 1]} : vector<1x384xf32> to vector<1x128xf32>
    %149 = arith.mulf %147, %132 : vector<1x128xf32>
    %150 = vector.extract_strided_slice %137 {offsets = [0, 384], sizes = [1, 128], strides = [1, 1]} : vector<1x512xf32> to vector<1x128xf32>
    %151 = math.tanh %150 : vector<1x128xf32>
    %152 = arith.mulf %146, %151 : vector<1x128xf32>
    %153 = arith.addf %149, %152 : vector<1x128xf32>
    %154 = math.tanh %153 : vector<1x128xf32>
    %155 = arith.mulf %148, %154 : vector<1x128xf32>
    %156 = vector.extract_strided_slice %5 {offsets = [7, 0], sizes = [1, 512], strides = [1, 1]} : vector<8x512xf32> to vector<1x512xf32>
    %cst_35 = arith.constant dense<0.000000e+00> : vector<1x512xf32>
    %157 = tpu.matmul %155, %6, %cst_35 {dimension_numbers = #tpu.dot_dimension_numbers<[1], [0], [0], [1], [0, 0, 1, 1], [], []>} : vector<1x128xf32>, vector<128x512xf32>, vector<1x512xf32> -> vector<1x512xf32>
    %158 = arith.addf %156, %157 : vector<1x512xf32>
    %159 = vector.extract_strided_slice %158 {offsets = [0, 0], sizes = [1, 384], strides = [1, 1]} : vector<1x512xf32> to vector<1x384xf32>
    %cst_36 = arith.constant 5.000000e-01 : f32
    %160 = vector.broadcast %cst_36 : f32 to vector<1x384xf32>
    %161 = arith.mulf %160, %159 : vector<1x384xf32>
    %162 = math.tanh %161 : vector<1x384xf32>
    %cst_37 = arith.constant 5.000000e-01 : f32
    %163 = vector.broadcast %cst_37 : f32 to vector<1x384xf32>
    %164 = arith.mulf %163, %162 : vector<1x384xf32>
    %cst_38 = arith.constant 5.000000e-01 : f32
    %165 = vector.broadcast %cst_38 : f32 to vector<1x384xf32>
    %166 = arith.addf %164, %165 : vector<1x384xf32>
    %167 = vector.extract_strided_slice %166 {offsets = [0, 0], sizes = [1, 128], strides = [1, 1]} : vector<1x384xf32> to vector<1x128xf32>
    %168 = vector.extract_strided_slice %166 {offsets = [0, 128], sizes = [1, 128], strides = [1, 1]} : vector<1x384xf32> to vector<1x128xf32>
    %169 = vector.extract_strided_slice %166 {offsets = [0, 256], sizes = [1, 128], strides = [1, 1]} : vector<1x384xf32> to vector<1x128xf32>
    %170 = arith.mulf %168, %153 : vector<1x128xf32>
    %171 = vector.extract_strided_slice %158 {offsets = [0, 384], sizes = [1, 128], strides = [1, 1]} : vector<1x512xf32> to vector<1x128xf32>
    %172 = math.tanh %171 : vector<1x128xf32>
    %173 = arith.mulf %167, %172 : vector<1x128xf32>
    %174 = arith.addf %170, %173 : vector<1x128xf32>
    %175 = math.tanh %174 : vector<1x128xf32>
    %176 = arith.mulf %169, %175 : vector<1x128xf32>
    %c184 = arith.constant 184 : index
    %c0_39 = arith.constant 0 : index
    %177 = vector.load %arg1[%c184, %c0_39] : memref<200x512xf32, #tpu.memory_space<vmem>>, vector<1x128xf32>
    %c192 = arith.constant 192 : index
    %c0_40 = arith.constant 0 : index
    %178 = vector.load %arg1[%c192, %c0_40] : memref<200x512xf32, #tpu.memory_space<vmem>>, vector<1x1xf32>
    %179 = arith.mulf %176, %177 : vector<1x128xf32>
    %cst_41 = arith.constant dense<0.000000e+00> : vector<1xf32>
    %180 = vector.multi_reduction <add>, %179, %cst_41 [1] : vector<1x128xf32> to vector<1xf32>
    %181 = vector.shape_cast %180 : vector<1xf32> to vector<1x1xf32>
    %182 = arith.addf %181, %178 : vector<1x1xf32>
    %cst_42 = arith.constant 5.000000e-01 : f32
    %183 = vector.broadcast %cst_42 : f32 to vector<1x1xf32>
    %184 = arith.mulf %183, %182 : vector<1x1xf32>
    %185 = math.tanh %184 : vector<1x1xf32>
    %cst_43 = arith.constant 5.000000e-01 : f32
    %186 = vector.broadcast %cst_43 : f32 to vector<1x1xf32>
    %187 = arith.mulf %186, %185 : vector<1x1xf32>
    %cst_44 = arith.constant 5.000000e-01 : f32
    %188 = vector.broadcast %cst_44 : f32 to vector<1x1xf32>
    %189 = arith.addf %187, %188 : vector<1x1xf32>
    %c0_45 = arith.constant 0 : index
    %c0_46 = arith.constant 0 : index
    %190 = vector.load %arg2[%c0_45, %c0_46] : memref<1x1xf32, #tpu.memory_space<vmem>>, vector<1x1xf32>
    tpu.vector_store %arg2[%c0_45, %c0_46], %189 {strides = array<i32>} : memref<1x1xf32, #tpu.memory_space<vmem>>, vector<1x1xf32>,
    return
  }
}

</mosaic_0001>

<llo_original>
// kernel: multimodal_lstm_forward.1
$region0: #{multimodal_lstm_forward.1}
  #allocation0 [shape = 'u32[]', space=smem, size = 0x4, offset = 0x4, fixed_abs, tag = 'smem constant byte address 0x4 - core index']
  #allocation1 [shape = 'u32[144,128]{1,0:T(1,128)}', space=vmem, size = 0x12000, scoped, tag = 'internal scratch']
  %s0 = inlined_call_operand.vmem [shape: f32[8,48], index: 0, kind: input, shape index: {}]
  %s1 = inlined_call_operand.hbm [shape: f32[200,512], index: 1, kind: input, shape index: {}]
  %s2 = inlined_call_operand.hbm [shape: f32[1,1], index: 2, kind: output, shape index: {}]
  %s3 = sld [smem:[#allocation0]]
  $region22: #{multimodal_lstm_forward.1} parent=0
    _
  %s5 = ssub.s32 1, %s3
  %s6 = scalar_select 0, %s5, %s3
  $region1: #{multimodal_lstm_forward.1} parent=0
    #allocation2 [shape = 'u8[409600]{0}', space=vmem, size = 0x64000, scoped, tag = 'input window, operand 1, single buffered']
    #allocation3 [shape = 's32[1]{0}', space=sflag, size = 0x4, scoped, tag = 'scoped memory for multimodal_lstm_forward.1']
    #allocation4 [shape = 's32[1]{0}', space=sflag, size = 0x4, scoped, tag = 'scoped memory for multimodal_lstm_forward.1']
    #allocation5 [shape = 'u8[512]{0}', space=vmem, size = 0x400, scoped, tag = 'output window, operand 0, single buffered']
    %7 = vsyncpa [#allocation3], 0
    %8 = vsyncpa [#allocation4], 0
    // Predicated region
    $region2: #{multimodal_lstm_forward.1} parent=1 // pred_check
      _
    $region3: #{multimodal_lstm_forward.1} parent=1 // pred_check_branch
      %10 = sbr.rel (0) target = $region5
    $region4: #{multimodal_lstm_forward.1} parent=1 // pred_region
      _
    $region5: #{multimodal_lstm_forward.1} parent=1 // pred_fallthru
      _
    // Predicated region
    $region6: #{multimodal_lstm_forward.1} parent=1 // pred_check
      _
    $region7: #{multimodal_lstm_forward.1} parent=1 // pred_check_branch
      %12 = sbr.rel (0) target = $region9
    $region8: #{multimodal_lstm_forward.1} parent=1 // pred_region
      %s14 = ssub.s32 12800, 12800
      %15 = vsyncadd [#allocation3], %s14
      %s16 = sshll.u32 [#allocation2], 4
      %s17 = int_to_ptr.vmem [resolvable:$true] %s16
      %22 = dma.hbm_to_vmem [thread:$0]  %s1, 12800, %s17, [#allocation3], 512, 512, 32
    $region9: #{multimodal_lstm_forward.1} parent=1 // pred_fallthru
      _
    // Predicated region
    $region10: #{multimodal_lstm_forward.1} parent=1 // pred_check
      _
    $region11: #{multimodal_lstm_forward.1} parent=1 // pred_check_branch
      %24 = sbr.rel (0) target = $region13
    $region12: #{multimodal_lstm_forward.1} parent=1 // pred_region
      %25 = dma.done [#allocation3], 12800
    $region13: #{multimodal_lstm_forward.1} parent=1 // pred_fallthru
      _
    %v26 = vld [vmem:[%s0] sm:$0xff]
    %v27 = vld [vmem:[#allocation2] sm:$0xff]
    %v28 = vld [vmem:[#allocation2 + $0x8] sm:$0xff]
    %v29 = vld [vmem:[#allocation2 + $0x10] sm:$0xff]
    %v30 = vld [vmem:[#allocation2 + $0x18] sm:$0xff]
    %v31 = vld [vmem:[#allocation2 + $0x20] sm:$0xff]
    %v32 = vld [vmem:[#allocation2 + $0x28] sm:$0xff]
    %v33 = vld [vmem:[#allocation2 + $0x30] sm:$0xff]
    %v34 = vld [vmem:[#allocation2 + $0x38] sm:$0xff]
    %v35 = vld [vmem:[#allocation2 + $0x40] sm:$0xff]
    %v36 = vld [vmem:[#allocation2 + $0x48] sm:$0xff]
    %v37 = vld [vmem:[#allocation2 + $0x50] sm:$0xff]
    %v38 = vld [vmem:[#allocation2 + $0x58] sm:$0xff]
    %v39 = vld [vmem:[#allocation2 + $0x60] sm:$0xff]
    %v40 = vld [vmem:[#allocation2 + $0x68] sm:$0xff]
    %v41 = vld [vmem:[#allocation2 + $0x70] sm:$0xff]
    %v42 = vld [vmem:[#allocation2 + $0x78] sm:$0xff]
    %v43 = vld [vmem:[#allocation2 + $0x80] sm:$0xff]
    %v44 = vld [vmem:[#allocation2 + $0x88] sm:$0xff]
    %v45 = vld [vmem:[#allocation2 + $0x90] sm:$0xff]
    %v46 = vld [vmem:[#allocation2 + $0x98] sm:$0xff]
    %v47 = vld [vmem:[#allocation2 + $0xa0] sm:$0xff]
    %v48 = vld [vmem:[#allocation2 + $0xa8] sm:$0xff]
    %v49 = vld [vmem:[#allocation2 + $0xb0] sm:$0xff]
    %v50 = vld [vmem:[#allocation2 + $0xb8] sm:$0xff]
    %s51 = scalar_lea.vmem [#allocation2], 704
    %v52 = vld [vmem:[%s51] ss:$8 sm:$0xf]
    %v54 = vlaneseq
    %v55 = vshrl.u32 %v54, 7
    %v56 = vsub.s32 0, %v55
    %v57 = vrot.slane %v52, %v56
    %v58 = vlaneseq
    %v59 = vshrl.u32 %v58, 7
    %v60 = vsub.s32 1, %v59
    %v61 = vrot.slane %v52, %v60
    %v62 = vlaneseq
    %v63 = vshrl.u32 %v62, 7
    %v64 = vsub.s32 2, %v63
    %v65 = vrot.slane %v52, %v64
    %v66 = vlaneseq
    %v67 = vshrl.u32 %v66, 7
    %v68 = vsub.s32 3, %v67
    %v69 = vrot.slane %v52, %v68
    %vm74 = vcmask 392192
    %v76 = vsel %vm74, %v26, 0
    %78 = vmatprep.subr.mxu0 %v28
    %79 = vmatpush1.msra.mxu0 %v27
    %80 = vmatprep.subr.mxu0 %v32
    %81 = vmatpush1.msra.mxu0 %v31
    %82 = vmatprep.subr.mxu0 %v36
    %83 = vmatpush1.msra.mxu0 %v35
    %84 = vmatprep.subr.mxu0 %v40
    %85 = vmatpush1.msra.mxu0 %v39
    %86 = vmatprep.subr.mxu0 %v44
    %87 = vmatpush1.msra.mxu0 %v43
    %88 = vmatprep.subr.mxu0 %v48
    %89 = vmatpush1.msra.mxu0 %v47
    %90 = vmatprep.subr.mxu0 0.0
    %91 = vmatpush1.msra.mxu0 0.0
    %92 = vmatprep.subr.mxu0 0.0
    %93 = vmatpush1.msra.mxu0 0.0
    %94 = vmatprep.subr.mxu0 0.0
    %95 = vmatpush1.msra.mxu0 0.0
    %96 = vmatprep.subr.mxu0 0.0
    %97 = vmatpush1.msra.mxu0 0.0
    %98 = vmatprep.subr.mxu0 0.0
    %99 = vmatpush1.msra.mxu0 0.0
    %100 = vmatprep.subr.mxu0 0.0
    %101 = vmatpush1.msra.mxu0 0.0
    %102 = vmatprep.subr.mxu0 0.0
    %103 = vmatpush1.msra.mxu0 0.0
    %104 = vmatprep.subr.mxu0 0.0
    %105 = vmatpush1.msra.mxu0 0.0
    %106 = vmatprep.subr.mxu0 0.0
    %107 = vmatpush1.msra.mxu0 0.0
    %108 = vmatprep.subr.mxu0 0.0
    %109 = vmatpush1.msra.mxu0 0.0
    %110 = vmatprep.subr.mxu0 0.0
    %111 = vmatpush1.msra.mxu0 0.0
    %112 = vmatprep.subr.mxu0 0.0
    %113 = vmatpush1.msra.mxu0 0.0
    %114 = vmatprep.subr.mxu0 0.0
    %115 = vmatpush1.msra.mxu0 0.0
    %116 = vmatprep.subr.mxu0 0.0
    %117 = vmatpush1.msra.mxu0 0.0
    %118 = vmatprep.subr.mxu0 0.0
    %119 = vmatpush1.msra.mxu0 0.0
    %120 = vmatprep.subr.mxu0 0.0
    %121 = vmatpush1.msra.mxu0 0.0
    %122 = vmatprep.subr.mxu0 0.0
    %123 = vmatpush1.msra.mxu0 0.0
    %124 = vmatprep.subr.mxu0 0.0
    %125 = vmatpush1.msra.mxu0 0.0
    %126 = vmatprep.subr.mxu0 0.0
    %127 = vmatpush1.msra.mxu0 0.0
    %128 = vmatprep.subr.mxu0 0.0
    %129 = vmatpush1.msra.mxu0 0.0
    %130 = vmatprep.subr.mxu0 0.0
    %131 = vmatpush1.msra.mxu0 0.0
    %132 = vmatprep.subr.mxu0 0.0
    %133 = vmatpush1.msra.mxu0 0.0
    %134 = vmatprep.subr.mxu0 0.0
    %135 = vmatpush1.msra.mxu0 0.0
    %136 = vmatprep.subr.mxu0 0.0
    %137 = vmatpush1.msra.mxu0 0.0
    %138 = vmatprep.subr.mxu0 0.0
    %139 = vmatpush1.msra.mxu0 0.0
    %140 = vmatprep.subr.mxu0 0.0
    %141 = vmatpush1.msra.mxu0 0.0
    %142 = vmatprep.mubr.f32.mxu0 0.0
    %143 = vmatmul.mubr.f32.gmra.mrb[0].mxu0 %v76
    %v144 = vpop.f32.mrb[0].mxu0
    %v145 = vadd.f32 %v57, %v144
    %v146 = vpop.f32.mrb[0].mxu0
    %v147 = vadd.f32 %v61, %v146
    %148 = vdwg.mxu0
    %149 = vmatprep.subr.mxu0 %v30
    %150 = vmatpush1.msra.mxu0 %v29
    %151 = vmatprep.subr.mxu0 %v34
    %152 = vmatpush1.msra.mxu0 %v33
    %153 = vmatprep.subr.mxu0 %v38
    %154 = vmatpush1.msra.mxu0 %v37
    %155 = vmatprep.subr.mxu0 %v42
    %156 = vmatpush1.msra.mxu0 %v41
    %157 = vmatprep.subr.mxu0 %v46
    %158 = vmatpush1.msra.mxu0 %v45
    %159 = vmatprep.subr.mxu0 %v50
    %160 = vmatpush1.msra.mxu0 %v49
    %161 = vmatprep.subr.mxu0 0.0
    %162 = vmatpush1.msra.mxu0 0.0
    %163 = vmatprep.subr.mxu0 0.0
    %164 = vmatpush1.msra.mxu0 0.0
    %165 = vmatprep.subr.mxu0 0.0
    %166 = vmatpush1.msra.mxu0 0.0
    %167 = vmatprep.subr.mxu0 0.0
    %168 = vmatpush1.msra.mxu0 0.0
    %169 = vmatprep.subr.mxu0 0.0
    %170 = vmatpush1.msra.mxu0 0.0
    %171 = vmatprep.subr.mxu0 0.0
    %172 = vmatpush1.msra.mxu0 0.0
    %173 = vmatprep.subr.mxu0 0.0
    %174 = vmatpush1.msra.mxu0 0.0
    %175 = vmatprep.subr.mxu0 0.0
    %176 = vmatpush1.msra.mxu0 0.0
    %177 = vmatprep.subr.mxu0 0.0
    %178 = vmatpush1.msra.mxu0 0.0
    %179 = vmatprep.subr.mxu0 0.0
    %180 = vmatpush1.msra.mxu0 0.0
    %181 = vmatprep.subr.mxu0 0.0
    %182 = vmatpush1.msra.mxu0 0.0
    %183 = vmatprep.subr.mxu0 0.0
    %184 = vmatpush1.msra.mxu0 0.0
    %185 = vmatprep.subr.mxu0 0.0
    %186 = vmatpush1.msra.mxu0 0.0
    %187 = vmatprep.subr.mxu0 0.0
    %188 = vmatpush1.msra.mxu0 0.0
    %189 = vmatprep.subr.mxu0 0.0
    %190 = vmatpush1.msra.mxu0 0.0
    %191 = vmatprep.subr.mxu0 0.0
    %192 = vmatpush1.msra.mxu0 0.0
    %193 = vmatprep.subr.mxu0 0.0
    %194 = vmatpush1.msra.mxu0 0.0
    %195 = vmatprep.subr.mxu0 0.0
    %196 = vmatpush1.msra.mxu0 0.0
    %197 = vmatprep.subr.mxu0 0.0
    %198 = vmatpush1.msra.mxu0 0.0
    %199 = vmatprep.subr.mxu0 0.0
    %200 = vmatpush1.msra.mxu0 0.0
    %201 = vmatprep.subr.mxu0 0.0
    %202 = vmatpush1.msra.mxu0 0.0
    %203 = vmatprep.subr.mxu0 0.0
    %204 = vmatpush1.msra.mxu0 0.0
    %205 = vmatprep.subr.mxu0 0.0
    %206 = vmatpush1.msra.mxu0 0.0
    %207 = vmatprep.subr.mxu0 0.0
    %208 = vmatpush1.msra.mxu0 0.0
    %209 = vmatprep.subr.mxu0 0.0
    %210 = vmatpush1.msra.mxu0 0.0
    %211 = vmatprep.subr.mxu0 0.0
    %212 = vmatpush1.msra.mxu0 0.0
    %213 = vmatprep.mubr.f32.mxu0 0.0
    %214 = vmatmul.mubr.f32.gmra.mrb[0].mxu0 %v76
    %v215 = vpop.f32.mrb[0].mxu0
    %v216 = vadd.f32 %v65, %v215
    %v217 = vpop.f32.mrb[0].mxu0
    %v218 = vadd.f32 %v69, %v217
    %219 = vdwg.mxu0
    %v220 = vld [vmem:[#allocation2 + $0xc0] sm:$0xff]
    %v221 = vld [vmem:[#allocation2 + $0xc8] sm:$0xff]
    %v222 = vld [vmem:[#allocation2 + $0xd0] sm:$0xff]
    %v223 = vld [vmem:[#allocation2 + $0xd8] sm:$0xff]
    %v224 = vld [vmem:[#allocation2 + $0xe0] sm:$0xff]
    %v225 = vld [vmem:[#allocation2 + $0xe8] sm:$0xff]
    %v226 = vld [vmem:[#allocation2 + $0xf0] sm:$0xff]
    %v227 = vld [vmem:[#allocation2 + $0xf8] sm:$0xff]
    %v228 = vld [vmem:[#allocation2 + $0x100] sm:$0xff]
    %v229 = vld [vmem:[#allocation2 + $0x108] sm:$0xff]
    %v230 = vld [vmem:[#allocation2 + $0x110] sm:$0xff]
    %v231 = vld [vmem:[#allocation2 + $0x118] sm:$0xff]
    %v232 = vld [vmem:[#allocation2 + $0x120] sm:$0xff]
    %v233 = vld [vmem:[#allocation2 + $0x128] sm:$0xff]
    %v234 = vld [vmem:[#allocation2 + $0x130] sm:$0xff]
    %v235 = vld [vmem:[#allocation2 + $0x138] sm:$0xff]
    %v236 = vld [vmem:[#allocation2 + $0x140] sm:$0xff]
    %v237 = vld [vmem:[#allocation2 + $0x148] sm:$0xff]
    %v238 = vld [vmem:[#allocation2 + $0x150] sm:$0xff]
    %v239 = vld [vmem:[#allocation2 + $0x158] sm:$0xff]
    %v240 = vld [vmem:[#allocation2 + $0x160] sm:$0xff]
    %v241 = vld [vmem:[#allocation2 + $0x168] sm:$0xff]
    %v242 = vld [vmem:[#allocation2 + $0x170] sm:$0xff]
    %v243 = vld [vmem:[#allocation2 + $0x178] sm:$0xff]
    %v244 = vld [vmem:[#allocation2 + $0x180] sm:$0xff]
    %v245 = vld [vmem:[#allocation2 + $0x188] sm:$0xff]
    %v246 = vld [vmem:[#allocation2 + $0x190] sm:$0xff]
    %v247 = vld [vmem:[#allocation2 + $0x198] sm:$0xff]
    %v248 = vld [vmem:[#allocation2 + $0x1a0] sm:$0xff]
    %v249 = vld [vmem:[#allocation2 + $0x1a8] sm:$0xff]
    %v250 = vld [vmem:[#allocation2 + $0x1b0] sm:$0xff]
    %v251 = vld [vmem:[#allocation2 + $0x1b8] sm:$0xff]
    %v252 = vld [vmem:[#allocation2 + $0x1c0] sm:$0xff]
    %v253 = vld [vmem:[#allocation2 + $0x1c8] sm:$0xff]
    %v254 = vld [vmem:[#allocation2 + $0x1d0] sm:$0xff]
    %v255 = vld [vmem:[#allocation2 + $0x1d8] sm:$0xff]
    %v256 = vld [vmem:[#allocation2 + $0x1e0] sm:$0xff]
    %v257 = vld [vmem:[#allocation2 + $0x1e8] sm:$0xff]
    %v258 = vld [vmem:[#allocation2 + $0x1f0] sm:$0xff]
    %v259 = vld [vmem:[#allocation2 + $0x1f8] sm:$0xff]
    %v260 = vld [vmem:[#allocation2 + $0x200] sm:$0xff]
    %v261 = vld [vmem:[#allocation2 + $0x208] sm:$0xff]
    %v262 = vld [vmem:[#allocation2 + $0x210] sm:$0xff]
    %v263 = vld [vmem:[#allocation2 + $0x218] sm:$0xff]
    %v264 = vld [vmem:[#allocation2 + $0x220] sm:$0xff]
    %v265 = vld [vmem:[#allocation2 + $0x228] sm:$0xff]
    %v266 = vld [vmem:[#allocation2 + $0x230] sm:$0xff]
    %v267 = vld [vmem:[#allocation2 + $0x238] sm:$0xff]
    %v268 = vld [vmem:[#allocation2 + $0x240] sm:$0xff]
    %v269 = vld [vmem:[#allocation2 + $0x248] sm:$0xff]
    %v270 = vld [vmem:[#allocation2 + $0x250] sm:$0xff]
    %v271 = vld [vmem:[#allocation2 + $0x258] sm:$0xff]
    %v272 = vld [vmem:[#allocation2 + $0x260] sm:$0xff]
    %v273 = vld [vmem:[#allocation2 + $0x268] sm:$0xff]
    %v274 = vld [vmem:[#allocation2 + $0x270] sm:$0xff]
    %v275 = vld [vmem:[#allocation2 + $0x278] sm:$0xff]
    %v276 = vld [vmem:[#allocation2 + $0x280] sm:$0xff]
    %v277 = vld [vmem:[#allocation2 + $0x288] sm:$0xff]
    %v278 = vld [vmem:[#allocation2 + $0x290] sm:$0xff]
    %v279 = vld [vmem:[#allocation2 + $0x298] sm:$0xff]
    %v280 = vld [vmem:[#allocation2 + $0x2a0] sm:$0xff]
    %v281 = vld [vmem:[#allocation2 + $0x2a8] sm:$0xff]
    %v282 = vld [vmem:[#allocation2 + $0x2b0] sm:$0xff]
    %v283 = vld [vmem:[#allocation2 + $0x2b8] sm:$0xff]
    %284 = vmatprep.subr.mxu0 %v221
    %285 = vmatpush1.msra.mxu0 %v220
    %286 = vmatprep.subr.mxu0 %v225
    %287 = vmatpush1.msra.mxu0 %v224
    %288 = vmatprep.subr.mxu0 %v229
    %289 = vmatpush1.msra.mxu0 %v228
    %290 = vmatprep.subr.mxu0 %v233
    %291 = vmatpush1.msra.mxu0 %v232
    %292 = vmatprep.subr.mxu0 %v237
    %293 = vmatpush1.msra.mxu0 %v236
    %294 = vmatprep.subr.mxu0 %v241
    %295 = vmatpush1.msra.mxu0 %v240
    %296 = vmatprep.subr.mxu0 %v245
    %297 = vmatpush1.msra.mxu0 %v244
    %298 = vmatprep.subr.mxu0 %v249
    %299 = vmatpush1.msra.mxu0 %v248
    %300 = vmatprep.subr.mxu0 %v253
    %301 = vmatpush1.msra.mxu0 %v252
    %302 = vmatprep.subr.mxu0 %v257
    %303 = vmatpush1.msra.mxu0 %v256
    %304 = vmatprep.subr.mxu0 %v261
    %305 = vmatpush1.msra.mxu0 %v260
    %306 = vmatprep.subr.mxu0 %v265
    %307 = vmatpush1.msra.mxu0 %v264
    %308 = vmatprep.subr.mxu0 %v269
    %309 = vmatpush1.msra.mxu0 %v268
    %310 = vmatprep.subr.mxu0 %v273
    %311 = vmatpush1.msra.mxu0 %v272
    %312 = vmatprep.subr.mxu0 %v277
    %313 = vmatpush1.msra.mxu0 %v276
    %314 = vmatprep.subr.mxu0 %v281
    %315 = vmatpush1.msra.mxu0 %v280
    %316 = vmatprep.subr.mxu0 0.0
    %317 = vmatpush1.msra.mxu0 0.0
    %318 = vmatprep.subr.mxu0 0.0
    %319 = vmatpush1.msra.mxu0 0.0
    %320 = vmatprep.subr.mxu0 0.0
    %321 = vmatpush1.msra.mxu0 0.0
    %322 = vmatprep.subr.mxu0 0.0
    %323 = vmatpush1.msra.mxu0 0.0
    %324 = vmatprep.subr.mxu0 0.0
    %325 = vmatpush1.msra.mxu0 0.0
    %326 = vmatprep.subr.mxu0 0.0
    %327 = vmatpush1.msra.mxu0 0.0
    %328 = vmatprep.subr.mxu0 0.0
    %329 = vmatpush1.msra.mxu0 0.0
    %330 = vmatprep.subr.mxu0 0.0
    %331 = vmatpush1.msra.mxu0 0.0
    %332 = vmatprep.subr.mxu0 0.0
    %333 = vmatpush1.msra.mxu0 0.0
    %334 = vmatprep.subr.mxu0 0.0
    %335 = vmatpush1.msra.mxu0 0.0
    %336 = vmatprep.subr.mxu0 0.0
    %337 = vmatpush1.msra.mxu0 0.0
    %338 = vmatprep.subr.mxu0 0.0
    %339 = vmatpush1.msra.mxu0 0.0
    %340 = vmatprep.subr.mxu0 0.0
    %341 = vmatpush1.msra.mxu0 0.0
    %342 = vmatprep.subr.mxu0 0.0
    %343 = vmatpush1.msra.mxu0 0.0
    %344 = vmatprep.subr.mxu0 0.0
    %345 = vmatpush1.msra.mxu0 0.0
    %346 = vmatprep.subr.mxu0 0.0
    %347 = vmatpush1.msra.mxu0 0.0
    %348 = vmatprep.mubr.f32.mxu0 0.0
    %349 = vmatmul.mubr.f32.gmra.mrb[0].mxu0 0.0
    %v350 = vpop.f32.mrb[0].mxu0
    %v351 = vadd.f32 0.0, %v350
    %v352 = vpop.f32.mrb[0].mxu0
    %v353 = vadd.f32 0.0, %v352
    %354 = vdwg.mxu0
    %355 = vmatprep.subr.mxu0 %v223
    %356 = vmatpush1.msra.mxu0 %v222
    %357 = vmatprep.subr.mxu0 %v227
    %358 = vmatpush1.msra.mxu0 %v226
    %359 = vmatprep.subr.mxu0 %v231
    %360 = vmatpush1.msra.mxu0 %v230
    %361 = vmatprep.subr.mxu0 %v235
    %362 = vmatpush1.msra.mxu0 %v234
    %363 = vmatprep.subr.mxu0 %v239
    %364 = vmatpush1.msra.mxu0 %v238
    %365 = vmatprep.subr.mxu0 %v243
    %366 = vmatpush1.msra.mxu0 %v242
    %367 = vmatprep.subr.mxu0 %v247
    %368 = vmatpush1.msra.mxu0 %v246
    %369 = vmatprep.subr.mxu0 %v251
    %370 = vmatpush1.msra.mxu0 %v250
    %371 = vmatprep.subr.mxu0 %v255
    %372 = vmatpush1.msra.mxu0 %v254
    %373 = vmatprep.subr.mxu0 %v259
    %374 = vmatpush1.msra.mxu0 %v258
    %375 = vmatprep.subr.mxu0 %v263
    %376 = vmatpush1.msra.mxu0 %v262
    %377 = vmatprep.subr.mxu0 %v267
    %378 = vmatpush1.msra.mxu0 %v266
    %379 = vmatprep.subr.mxu0 %v271
    %380 = vmatpush1.msra.mxu0 %v270
    %381 = vmatprep.subr.mxu0 %v275
    %382 = vmatpush1.msra.mxu0 %v274
    %383 = vmatprep.subr.mxu0 %v279
    %384 = vmatpush1.msra.mxu0 %v278
    %385 = vmatprep.subr.mxu0 %v283
    %386 = vmatpush1.msra.mxu0 %v282
    %387 = vmatprep.subr.mxu0 0.0
    %388 = vmatpush1.msra.mxu0 0.0
    %389 = vmatprep.subr.mxu0 0.0
    %390 = vmatpush1.msra.mxu0 0.0
    %391 = vmatprep.subr.mxu0 0.0
    %392 = vmatpush1.msra.mxu0 0.0
    %393 = vmatprep.subr.mxu0 0.0
    %394 = vmatpush1.msra.mxu0 0.0
    %395 = vmatprep.subr.mxu0 0.0
    %396 = vmatpush1.msra.mxu0 0.0
    %397 = vmatprep.subr.mxu0 0.0
    %398 = vmatpush1.msra.mxu0 0.0
    %399 = vmatprep.subr.mxu0 0.0
    %400 = vmatpush1.msra.mxu0 0.0
    %401 = vmatprep.subr.mxu0 0.0
    %402 = vmatpush1.msra.mxu0 0.0
    %403 = vmatprep.subr.mxu0 0.0
    %404 = vmatpush1.msra.mxu0 0.0
    %405 = vmatprep.subr.mxu0 0.0
    %406 = vmatpush1.msra.mxu0 0.0
    %407 = vmatprep.subr.mxu0 0.0
    %408 = vmatpush1.msra.mxu0 0.0
    %409 = vmatprep.subr.mxu0 0.0
    %410 = vmatpush1.msra.mxu0 0.0
    %411 = vmatprep.subr.mxu0 0.0
    %412 = vmatpush1.msra.mxu0 0.0
    %413 = vmatprep.subr.mxu0 0.0
    %414 = vmatpush1.msra.mxu0 0.0
    %415 = vmatprep.subr.mxu0 0.0
    %416 = vmatpush1.msra.mxu0 0.0
    %417 = vmatprep.subr.mxu0 0.0
    %418 = vmatpush1.msra.mxu0 0.0
    %419 = vmatprep.mubr.f32.mxu0 0.0
    %420 = vmatmul.mubr.f32.gmra.mrb[0].mxu0 0.0
    %v421 = vpop.f32.mrb[0].mxu0
    %v422 = vadd.f32 0.0, %v421
    %v423 = vpop.f32.mrb[0].mxu0
    %v424 = vadd.f32 0.0, %v423
    %425 = vdwg.mxu0
    %v426 = vadd.f32 %v145, %v351
    %v427 = vadd.f32 %v147, %v353
    %v428 = vadd.f32 %v216, %v422
    %v429 = vadd.f32 %v218, %v424
    %v430 = vmul.f32 %v426, 0.5
    %v431 = vmul.f32 %v427, 0.5
    %v432 = vmul.f32 %v428, 0.5
    %v433 = vtanh.pop %v430
    %v434 = vtanh.pop %v431
    %v435 = vtanh.pop %v432
    %v436 = vmul.f32 %v433, 0.5
    %v437 = vmul.f32 %v434, 0.5
    %v438 = vmul.f32 %v435, 0.5
    %v439 = vadd.f32 %v436, 0.5
    %v440 = vadd.f32 %v437, 0.5
    %v441 = vadd.f32 %v438, 0.5
    %v442 = vmul.f32 %v440, 0.0
    %v443 = vtanh.pop %v429
    %v444 = vmul.f32 %v439, %v443
    %v445 = vadd.f32 %v442, %v444
    %v446 = vtanh.pop %v445
    %v447 = vmul.f32 %v441, %v446
    %448 = vmatprep.subr.mxu0 %v221
    %449 = vmatpush1.msra.mxu0 %v220
    %450 = vmatprep.subr.mxu0 %v225
    %451 = vmatpush1.msra.mxu0 %v224
    %452 = vmatprep.subr.mxu0 %v229
    %453 = vmatpush1.msra.mxu0 %v228
    %454 = vmatprep.subr.mxu0 %v233
    %455 = vmatpush1.msra.mxu0 %v232
    %456 = vmatprep.subr.mxu0 %v237
    %457 = vmatpush1.msra.mxu0 %v236
    %458 = vmatprep.subr.mxu0 %v241
    %459 = vmatpush1.msra.mxu0 %v240
    %460 = vmatprep.subr.mxu0 %v245
    %461 = vmatpush1.msra.mxu0 %v244
    %462 = vmatprep.subr.mxu0 %v249
    %463 = vmatpush1.msra.mxu0 %v248
    %464 = vmatprep.subr.mxu0 %v253
    %465 = vmatpush1.msra.mxu0 %v252
    %466 = vmatprep.subr.mxu0 %v257
    %467 = vmatpush1.msra.mxu0 %v256
    %468 = vmatprep.subr.mxu0 %v261
    %469 = vmatpush1.msra.mxu0 %v260
    %470 = vmatprep.subr.mxu0 %v265
    %471 = vmatpush1.msra.mxu0 %v264
    %472 = vmatprep.subr.mxu0 %v269
    %473 = vmatpush1.msra.mxu0 %v268
    %474 = vmatprep.subr.mxu0 %v273
    %475 = vmatpush1.msra.mxu0 %v272
    %476 = vmatprep.subr.mxu0 %v277
    %477 = vmatpush1.msra.mxu0 %v276
    %478 = vmatprep.subr.mxu0 %v281
    %479 = vmatpush1.msra.mxu0 %v280
    %480 = vmatprep.subr.mxu0 0.0
    %481 = vmatpush1.msra.mxu0 0.0
    %482 = vmatprep.subr.mxu0 0.0
    %483 = vmatpush1.msra.mxu0 0.0
    %484 = vmatprep.subr.mxu0 0.0
    %485 = vmatpush1.msra.mxu0 0.0
    %486 = vmatprep.subr.mxu0 0.0
    %487 = vmatpush1.msra.mxu0 0.0
    %488 = vmatprep.subr.mxu0 0.0
    %489 = vmatpush1.msra.mxu0 0.0
    %490 = vmatprep.subr.mxu0 0.0
    %491 = vmatpush1.msra.mxu0 0.0
    %492 = vmatprep.subr.mxu0 0.0
    %493 = vmatpush1.msra.mxu0 0.0
    %494 = vmatprep.subr.mxu0 0.0
    %495 = vmatpush1.msra.mxu0 0.0
    %496 = vmatprep.subr.mxu0 0.0
    %497 = vmatpush1.msra.mxu0 0.0
    %498 = vmatprep.subr.mxu0 0.0
    %499 = vmatpush1.msra.mxu0 0.0
    %500 = vmatprep.subr.mxu0 0.0
    %501 = vmatpush1.msra.mxu0 0.0
    %502 = vmatprep.subr.mxu0 0.0
    %503 = vmatpush1.msra.mxu0 0.0
    %504 = vmatprep.subr.mxu0 0.0
    %505 = vmatpush1.msra.mxu0 0.0
    %506 = vmatprep.subr.mxu0 0.0
    %507 = vmatpush1.msra.mxu0 0.0
    %508 = vmatprep.subr.mxu0 0.0
    %509 = vmatpush1.msra.mxu0 0.0
    %510 = vmatprep.subr.mxu0 0.0
    %511 = vmatpush1.msra.mxu0 0.0
    %512 = vmatprep.mubr.f32.mxu0 0.0
    %513 = vmatmul.mubr.f32.gmra.mrb[0].mxu0 %v447
    %v514 = vpop.f32.mrb[0].mxu0
    %v515 = vadd.f32 0.0, %v514
    %v516 = vpop.f32.mrb[0].mxu0
    %v517 = vadd.f32 0.0, %v516
    %518 = vdwg.mxu0
    %519 = vmatprep.subr.mxu0 %v223
    %520 = vmatpush1.msra.mxu0 %v222
    %521 = vmatprep.subr.mxu0 %v227
    %522 = vmatpush1.msra.mxu0 %v226
    %523 = vmatprep.subr.mxu0 %v231
    %524 = vmatpush1.msra.mxu0 %v230
    %525 = vmatprep.subr.mxu0 %v235
    %526 = vmatpush1.msra.mxu0 %v234
    %527 = vmatprep.subr.mxu0 %v239
    %528 = vmatpush1.msra.mxu0 %v238
    %529 = vmatprep.subr.mxu0 %v243
    %530 = vmatpush1.msra.mxu0 %v242
    %531 = vmatprep.subr.mxu0 %v247
    %532 = vmatpush1.msra.mxu0 %v246
    %533 = vmatprep.subr.mxu0 %v251
    %534 = vmatpush1.msra.mxu0 %v250
    %535 = vmatprep.subr.mxu0 %v255
    %536 = vmatpush1.msra.mxu0 %v254
    %537 = vmatprep.subr.mxu0 %v259
    %538 = vmatpush1.msra.mxu0 %v258
    %539 = vmatprep.subr.mxu0 %v263
    %540 = vmatpush1.msra.mxu0 %v262
    %541 = vmatprep.subr.mxu0 %v267
    %542 = vmatpush1.msra.mxu0 %v266
    %543 = vmatprep.subr.mxu0 %v271
    %544 = vmatpush1.msra.mxu0 %v270
    %545 = vmatprep.subr.mxu0 %v275
    %546 = vmatpush1.msra.mxu0 %v274
    %547 = vmatprep.subr.mxu0 %v279
    %548 = vmatpush1.msra.mxu0 %v278
    %549 = vmatprep.subr.mxu0 %v283
    %550 = vmatpush1.msra.mxu0 %v282
    %551 = vmatprep.subr.mxu0 0.0
    %552 = vmatpush1.msra.mxu0 0.0
    %553 = vmatprep.subr.mxu0 0.0
    %554 = vmatpush1.msra.mxu0 0.0
    %555 = vmatprep.subr.mxu0 0.0
    %556 = vmatpush1.msra.mxu0 0.0
    %557 = vmatprep.subr.mxu0 0.0
    %558 = vmatpush1.msra.mxu0 0.0
    %559 = vmatprep.subr.mxu0 0.0
    %560 = vmatpush1.msra.mxu0 0.0
    %561 = vmatprep.subr.mxu0 0.0
    %562 = vmatpush1.msra.mxu0 0.0
    %563 = vmatprep.subr.mxu0 0.0
    %564 = vmatpush1.msra.mxu0 0.0
    %565 = vmatprep.subr.mxu0 0.0
    %566 = vmatpush1.msra.mxu0 0.0
    %567 = vmatprep.subr.mxu0 0.0
    %568 = vmatpush1.msra.mxu0 0.0
    %569 = vmatprep.subr.mxu0 0.0
    %570 = vmatpush1.msra.mxu0 0.0
    %571 = vmatprep.subr.mxu0 0.0
    %572 = vmatpush1.msra.mxu0 0.0
    %573 = vmatprep.subr.mxu0 0.0
    %574 = vmatpush1.msra.mxu0 0.0
    %575 = vmatprep.subr.mxu0 0.0
    %576 = vmatpush1.msra.mxu0 0.0
    %577 = vmatprep.subr.mxu0 0.0
    %578 = vmatpush1.msra.mxu0 0.0
    %579 = vmatprep.subr.mxu0 0.0
    %580 = vmatpush1.msra.mxu0 0.0
    %581 = vmatprep.subr.mxu0 0.0
    %582 = vmatpush1.msra.mxu0 0.0
    %583 = vmatprep.mubr.f32.mxu0 0.0
    %584 = vmatmul.mubr.f32.gmra.mrb[0].mxu0 %v447
    %v585 = vpop.f32.mrb[0].mxu0
    %v586 = vadd.f32 0.0, %v585
    %v587 = vpop.f32.mrb[0].mxu0
    %v588 = vadd.f32 0.0, %v587
    %589 = vdwg.mxu0
    %v594 = vrot.slane %v515, 7
    %v595 = vrot.slane %v517, 7
    %v596 = vrot.slane %v586, 7
    %v597 = vrot.slane %v588, 7
    %v602 = vadd.f32 %v145, %v594
    %v603 = vadd.f32 %v147, %v595
    %v604 = vadd.f32 %v216, %v596
    %v605 = vadd.f32 %v218, %v597
    %v606 = vmul.f32 %v602, 0.5
    %v607 = vmul.f32 %v603, 0.5
    %v608 = vmul.f32 %v604, 0.5
    %v609 = vtanh.pop %v606
    %v610 = vtanh.pop %v607
    %v611 = vtanh.pop %v608
    %v612 = vmul.f32 %v609, 0.5
    %v613 = vmul.f32 %v610, 0.5
    %v614 = vmul.f32 %v611, 0.5
    %v615 = vadd.f32 %v612, 0.5
    %v616 = vadd.f32 %v613, 0.5
    %v617 = vadd.f32 %v614, 0.5
    %v619 = vrot.slane %v445, 7
    %v621 = vmul.f32 %v616, %v619
    %v622 = vtanh.pop %v605
    %v623 = vmul.f32 %v615, %v622
    %v624 = vadd.f32 %v621, %v623
    %v625 = vtanh.pop %v624
    %v626 = vmul.f32 %v617, %v625
    %v628 = vrot.slane %v626, 1
    %630 = vmatprep.subr.mxu0 %v221
    %631 = vmatpush1.msra.mxu0 %v220
    %632 = vmatprep.subr.mxu0 %v225
    %633 = vmatpush1.msra.mxu0 %v224
    %634 = vmatprep.subr.mxu0 %v229
    %635 = vmatpush1.msra.mxu0 %v228
    %636 = vmatprep.subr.mxu0 %v233
    %637 = vmatpush1.msra.mxu0 %v232
    %638 = vmatprep.subr.mxu0 %v237
    %639 = vmatpush1.msra.mxu0 %v236
    %640 = vmatprep.subr.mxu0 %v241
    %641 = vmatpush1.msra.mxu0 %v240
    %642 = vmatprep.subr.mxu0 %v245
    %643 = vmatpush1.msra.mxu0 %v244
    %644 = vmatprep.subr.mxu0 %v249
    %645 = vmatpush1.msra.mxu0 %v248
    %646 = vmatprep.subr.mxu0 %v253
    %647 = vmatpush1.msra.mxu0 %v252
    %648 = vmatprep.subr.mxu0 %v257
    %649 = vmatpush1.msra.mxu0 %v256
    %650 = vmatprep.subr.mxu0 %v261
    %651 = vmatpush1.msra.mxu0 %v260
    %652 = vmatprep.subr.mxu0 %v265
    %653 = vmatpush1.msra.mxu0 %v264
    %654 = vmatprep.subr.mxu0 %v269
    %655 = vmatpush1.msra.mxu0 %v268
    %656 = vmatprep.subr.mxu0 %v273
    %657 = vmatpush1.msra.mxu0 %v272
    %658 = vmatprep.subr.mxu0 %v277
    %659 = vmatpush1.msra.mxu0 %v276
    %660 = vmatprep.subr.mxu0 %v281
    %661 = vmatpush1.msra.mxu0 %v280
    %662 = vmatprep.subr.mxu0 0.0
    %663 = vmatpush1.msra.mxu0 0.0
    %664 = vmatprep.subr.mxu0 0.0
    %665 = vmatpush1.msra.mxu0 0.0
    %666 = vmatprep.subr.mxu0 0.0
    %667 = vmatpush1.msra.mxu0 0.0
    %668 = vmatprep.subr.mxu0 0.0
    %669 = vmatpush1.msra.mxu0 0.0
    %670 = vmatprep.subr.mxu0 0.0
    %671 = vmatpush1.msra.mxu0 0.0
    %672 = vmatprep.subr.mxu0 0.0
    %673 = vmatpush1.msra.mxu0 0.0
    %674 = vmatprep.subr.mxu0 0.0
    %675 = vmatpush1.msra.mxu0 0.0
    %676 = vmatprep.subr.mxu0 0.0
    %677 = vmatpush1.msra.mxu0 0.0
    %678 = vmatprep.subr.mxu0 0.0
    %679 = vmatpush1.msra.mxu0 0.0
    %680 = vmatprep.subr.mxu0 0.0
    %681 = vmatpush1.msra.mxu0 0.0
    %682 = vmatprep.subr.mxu0 0.0
    %683 = vmatpush1.msra.mxu0 0.0
    %684 = vmatprep.subr.mxu0 0.0
    %685 = vmatpush1.msra.mxu0 0.0
    %686 = vmatprep.subr.mxu0 0.0
    %687 = vmatpush1.msra.mxu0 0.0
    %688 = vmatprep.subr.mxu0 0.0
    %689 = vmatpush1.msra.mxu0 0.0
    %690 = vmatprep.subr.mxu0 0.0
    %691 = vmatpush1.msra.mxu0 0.0
    %692 = vmatprep.subr.mxu0 0.0
    %693 = vmatpush1.msra.mxu0 0.0
    %694 = vmatprep.mubr.f32.mxu0 0.0
    %695 = vmatmul.mubr.f32.gmra.mrb[0].mxu0 %v628
    %v696 = vpop.f32.mrb[0].mxu0
    %v697 = vadd.f32 0.0, %v696
    %v698 = vpop.f32.mrb[0].mxu0
    %v699 = vadd.f32 0.0, %v698
    %700 = vdwg.mxu0
    %701 = vmatprep.subr.mxu0 %v223
    %702 = vmatpush1.msra.mxu0 %v222
    %703 = vmatprep.subr.mxu0 %v227
    %704 = vmatpush1.msra.mxu0 %v226
    %705 = vmatprep.subr.mxu0 %v231
    %706 = vmatpush1.msra.mxu0 %v230
    %707 = vmatprep.subr.mxu0 %v235
    %708 = vmatpush1.msra.mxu0 %v234
    %709 = vmatprep.subr.mxu0 %v239
    %710 = vmatpush1.msra.mxu0 %v238
    %711 = vmatprep.subr.mxu0 %v243
    %712 = vmatpush1.msra.mxu0 %v242
    %713 = vmatprep.subr.mxu0 %v247
    %714 = vmatpush1.msra.mxu0 %v246
    %715 = vmatprep.subr.mxu0 %v251
    %716 = vmatpush1.msra.mxu0 %v250
    %717 = vmatprep.subr.mxu0 %v255
    %718 = vmatpush1.msra.mxu0 %v254
    %719 = vmatprep.subr.mxu0 %v259
    %720 = vmatpush1.msra.mxu0 %v258
    %721 = vmatprep.subr.mxu0 %v263
    %722 = vmatpush1.msra.mxu0 %v262
    %723 = vmatprep.subr.mxu0 %v267
    %724 = vmatpush1.msra.mxu0 %v266
    %725 = vmatprep.subr.mxu0 %v271
    %726 = vmatpush1.msra.mxu0 %v270
    %727 = vmatprep.subr.mxu0 %v275
    %728 = vmatpush1.msra.mxu0 %v274
    %729 = vmatprep.subr.mxu0 %v279
    %730 = vmatpush1.msra.mxu0 %v278
    %731 = vmatprep.subr.mxu0 %v283
    %732 = vmatpush1.msra.mxu0 %v282
    %733 = vmatprep.subr.mxu0 0.0
    %734 = vmatpush1.msra.mxu0 0.0
    %735 = vmatprep.subr.mxu0 0.0
    %736 = vmatpush1.msra.mxu0 0.0
    %737 = vmatprep.subr.mxu0 0.0
    %738 = vmatpush1.msra.mxu0 0.0
    %739 = vmatprep.subr.mxu0 0.0
    %740 = vmatpush1.msra.mxu0 0.0
    %741 = vmatprep.subr.mxu0 0.0
    %742 = vmatpush1.msra.mxu0 0.0
    %743 = vmatprep.subr.mxu0 0.0
    %744 = vmatpush1.msra.mxu0 0.0
    %745 = vmatprep.subr.mxu0 0.0
    %746 = vmatpush1.msra.mxu0 0.0
    %747 = vmatprep.subr.mxu0 0.0
    %748 = vmatpush1.msra.mxu0 0.0
    %749 = vmatprep.subr.mxu0 0.0
    %750 = vmatpush1.msra.mxu0 0.0
    %751 = vmatprep.subr.mxu0 0.0
    %752 = vmatpush1.msra.mxu0 0.0
    %753 = vmatprep.subr.mxu0 0.0
    %754 = vmatpush1.msra.mxu0 0.0
    %755 = vmatprep.subr.mxu0 0.0
    %756 = vmatpush1.msra.mxu0 0.0
    %757 = vmatprep.subr.mxu0 0.0
    %758 = vmatpush1.msra.mxu0 0.0
    %759 = vmatprep.subr.mxu0 0.0
    %760 = vmatpush1.msra.mxu0 0.0
    %761 = vmatprep.subr.mxu0 0.0
    %762 = vmatpush1.msra.mxu0 0.0
    %763 = vmatprep.subr.mxu0 0.0
    %764 = vmatpush1.msra.mxu0 0.0
    %765 = vmatprep.mubr.f32.mxu0 0.0
    %766 = vmatmul.mubr.f32.gmra.mrb[0].mxu0 %v628
    %v767 = vpop.f32.mrb[0].mxu0
    %v768 = vadd.f32 0.0, %v767
    %v769 = vpop.f32.mrb[0].mxu0
    %v770 = vadd.f32 0.0, %v769
    %771 = vdwg.mxu0
    %v776 = vrot.slane %v697, 6
    %v777 = vrot.slane %v699, 6
    %v778 = vrot.slane %v768, 6
    %v779 = vrot.slane %v770, 6
    %v784 = vadd.f32 %v145, %v776
    %v785 = vadd.f32 %v147, %v777
    %v786 = vadd.f32 %v216, %v778
    %v787 = vadd.f32 %v218, %v779
    %v788 = vmul.f32 %v784, 0.5
    %v789 = vmul.f32 %v785, 0.5
    %v790 = vmul.f32 %v786, 0.5
    %v791 = vtanh.pop %v788
    %v792 = vtanh.pop %v789
    %v793 = vtanh.pop %v790
    %v794 = vmul.f32 %v791, 0.5
    %v795 = vmul.f32 %v792, 0.5
    %v796 = vmul.f32 %v793, 0.5
    %v797 = vadd.f32 %v794, 0.5
    %v798 = vadd.f32 %v795, 0.5
    %v799 = vadd.f32 %v796, 0.5
    %v801 = vrot.slane %v624, 7
    %v803 = vmul.f32 %v798, %v801
    %v804 = vtanh.pop %v787
    %v805 = vmul.f32 %v797, %v804
    %v806 = vadd.f32 %v803, %v805
    %v807 = vtanh.pop %v806
    %v808 = vmul.f32 %v799, %v807
    %v810 = vrot.slane %v808, 2
    %812 = vmatprep.subr.mxu0 %v221
    %813 = vmatpush1.msra.mxu0 %v220
    %814 = vmatprep.subr.mxu0 %v225
    %815 = vmatpush1.msra.mxu0 %v224
    %816 = vmatprep.subr.mxu0 %v229
    %817 = vmatpush1.msra.mxu0 %v228
    %818 = vmatprep.subr.mxu0 %v233
    %819 = vmatpush1.msra.mxu0 %v232
    %820 = vmatprep.subr.mxu0 %v237
    %821 = vmatpush1.msra.mxu0 %v236
    %822 = vmatprep.subr.mxu0 %v241
    %823 = vmatpush1.msra.mxu0 %v240
    %824 = vmatprep.subr.mxu0 %v245
    %825 = vmatpush1.msra.mxu0 %v244
    %826 = vmatprep.subr.mxu0 %v249
    %827 = vmatpush1.msra.mxu0 %v248
    %828 = vmatprep.subr.mxu0 %v253
    %829 = vmatpush1.msra.mxu0 %v252
    %830 = vmatprep.subr.mxu0 %v257
    %831 = vmatpush1.msra.mxu0 %v256
    %832 = vmatprep.subr.mxu0 %v261
    %833 = vmatpush1.msra.mxu0 %v260
    %834 = vmatprep.subr.mxu0 %v265
    %835 = vmatpush1.msra.mxu0 %v264
    %836 = vmatprep.subr.mxu0 %v269
    %837 = vmatpush1.msra.mxu0 %v268
    %838 = vmatprep.subr.mxu0 %v273
    %839 = vmatpush1.msra.mxu0 %v272
    %840 = vmatprep.subr.mxu0 %v277
    %841 = vmatpush1.msra.mxu0 %v276
    %842 = vmatprep.subr.mxu0 %v281
    %843 = vmatpush1.msra.mxu0 %v280
    %844 = vmatprep.subr.mxu0 0.0
    %845 = vmatpush1.msra.mxu0 0.0
    %846 = vmatprep.subr.mxu0 0.0
    %847 = vmatpush1.msra.mxu0 0.0
    %848 = vmatprep.subr.mxu0 0.0
    %849 = vmatpush1.msra.mxu0 0.0
    %850 = vmatprep.subr.mxu0 0.0
    %851 = vmatpush1.msra.mxu0 0.0
    %852 = vmatprep.subr.mxu0 0.0
    %853 = vmatpush1.msra.mxu0 0.0
    %854 = vmatprep.subr.mxu0 0.0
    %855 = vmatpush1.msra.mxu0 0.0
    %856 = vmatprep.subr.mxu0 0.0
    %857 = vmatpush1.msra.mxu0 0.0
    %858 = vmatprep.subr.mxu0 0.0
    %859 = vmatpush1.msra.mxu0 0.0
    %860 = vmatprep.subr.mxu0 0.0
    %861 = vmatpush1.msra.mxu0 0.0
    %862 = vmatprep.subr.mxu0 0.0
    %863 = vmatpush1.msra.mxu0 0.0
    %864 = vmatprep.subr.mxu0 0.0
    %865 = vmatpush1.msra.mxu0 0.0
    %866 = vmatprep.subr.mxu0 0.0
    %867 = vmatpush1.msra.mxu0 0.0
    %868 = vmatprep.subr.mxu0 0.0
    %869 = vmatpush1.msra.mxu0 0.0
    %870 = vmatprep.subr.mxu0 0.0
    %871 = vmatpush1.msra.mxu0 0.0
    %872 = vmatprep.subr.mxu0 0.0
    %873 = vmatpush1.msra.mxu0 0.0
    %874 = vmatprep.subr.mxu0 0.0
    %875 = vmatpush1.msra.mxu0 0.0
    %876 = vmatprep.mubr.f32.mxu0 0.0
    %877 = vmatmul.mubr.f32.gmra.mrb[0].mxu0 %v810
    %v878 = vpop.f32.mrb[0].mxu0
    %v879 = vadd.f32 0.0, %v878
    %v880 = vpop.f32.mrb[0].mxu0
    %v881 = vadd.f32 0.0, %v880
    %882 = vdwg.mxu0
    %883 = vmatprep.subr.mxu0 %v223
    %884 = vmatpush1.msra.mxu0 %v222
    %885 = vmatprep.subr.mxu0 %v227
    %886 = vmatpush1.msra.mxu0 %v226
    %887 = vmatprep.subr.mxu0 %v231
    %888 = vmatpush1.msra.mxu0 %v230
    %889 = vmatprep.subr.mxu0 %v235
    %890 = vmatpush1.msra.mxu0 %v234
    %891 = vmatprep.subr.mxu0 %v239
    %892 = vmatpush1.msra.mxu0 %v238
    %893 = vmatprep.subr.mxu0 %v243
    %894 = vmatpush1.msra.mxu0 %v242
    %895 = vmatprep.subr.mxu0 %v247
    %896 = vmatpush1.msra.mxu0 %v246
    %897 = vmatprep.subr.mxu0 %v251
    %898 = vmatpush1.msra.mxu0 %v250
    %899 = vmatprep.subr.mxu0 %v255
    %900 = vmatpush1.msra.mxu0 %v254
    %901 = vmatprep.subr.mxu0 %v259
    %902 = vmatpush1.msra.mxu0 %v258
    %903 = vmatprep.subr.mxu0 %v263
    %904 = vmatpush1.msra.mxu0 %v262
    %905 = vmatprep.subr.mxu0 %v267
    %906 = vmatpush1.msra.mxu0 %v266
    %907 = vmatprep.subr.mxu0 %v271
    %908 = vmatpush1.msra.mxu0 %v270
    %909 = vmatprep.subr.mxu0 %v275
    %910 = vmatpush1.msra.mxu0 %v274
    %911 = vmatprep.subr.mxu0 %v279
    %912 = vmatpush1.msra.mxu0 %v278
    %913 = vmatprep.subr.mxu0 %v283
    %914 = vmatpush1.msra.mxu0 %v282
    %915 = vmatprep.subr.mxu0 0.0
    %916 = vmatpush1.msra.mxu0 0.0
    %917 = vmatprep.subr.mxu0 0.0
    %918 = vmatpush1.msra.mxu0 0.0
    %919 = vmatprep.subr.mxu0 0.0
    %920 = vmatpush1.msra.mxu0 0.0
    %921 = vmatprep.subr.mxu0 0.0
    %922 = vmatpush1.msra.mxu0 0.0
    %923 = vmatprep.subr.mxu0 0.0
    %924 = vmatpush1.msra.mxu0 0.0
    %925 = vmatprep.subr.mxu0 0.0
    %926 = vmatpush1.msra.mxu0 0.0
    %927 = vmatprep.subr.mxu0 0.0
    %928 = vmatpush1.msra.mxu0 0.0
    %929 = vmatprep.subr.mxu0 0.0
    %930 = vmatpush1.msra.mxu0 0.0
    %931 = vmatprep.subr.mxu0 0.0
    %932 = vmatpush1.msra.mxu0 0.0
    %933 = vmatprep.subr.mxu0 0.0
    %934 = vmatpush1.msra.mxu0 0.0
    %935 = vmatprep.subr.mxu0 0.0
    %936 = vmatpush1.msra.mxu0 0.0
    %937 = vmatprep.subr.mxu0 0.0
    %938 = vmatpush1.msra.mxu0 0.0
    %939 = vmatprep.subr.mxu0 0.0
    %940 = vmatpush1.msra.mxu0 0.0
    %941 = vmatprep.subr.mxu0 0.0
    %942 = vmatpush1.msra.mxu0 0.0
    %943 = vmatprep.subr.mxu0 0.0
    %944 = vmatpush1.msra.mxu0 0.0
    %945 = vmatprep.subr.mxu0 0.0
    %946 = vmatpush1.msra.mxu0 0.0
    %947 = vmatprep.mubr.f32.mxu0 0.0
    %948 = vmatmul.mubr.f32.gmra.mrb[0].mxu0 %v810
    %v949 = vpop.f32.mrb[0].mxu0
    %v950 = vadd.f32 0.0, %v949
    %v951 = vpop.f32.mrb[0].mxu0
    %v952 = vadd.f32 0.0, %v951
    %953 = vdwg.mxu0
    %v958 = vrot.slane %v879, 5
    %v959 = vrot.slane %v881, 5
    %v960 = vrot.slane %v950, 5
    %v961 = vrot.slane %v952, 5
    %v966 = vadd.f32 %v145, %v958
    %v967 = vadd.f32 %v147, %v959
    %v968 = vadd.f32 %v216, %v960
    %v969 = vadd.f32 %v218, %v961
    %v970 = vmul.f32 %v966, 0.5
    %v971 = vmul.f32 %v967, 0.5
    %v972 = vmul.f32 %v968, 0.5
    %v973 = vtanh.pop %v970
    %v974 = vtanh.pop %v971
    %v975 = vtanh.pop %v972
    %v976 = vmul.f32 %v973, 0.5
    %v977 = vmul.f32 %v974, 0.5
    %v978 = vmul.f32 %v975, 0.5
    %v979 = vadd.f32 %v976, 0.5
    %v980 = vadd.f32 %v977, 0.5
    %v981 = vadd.f32 %v978, 0.5
    %v983 = vrot.slane %v806, 7
    %v985 = vmul.f32 %v980, %v983
    %v986 = vtanh.pop %v969
    %v987 = vmul.f32 %v979, %v986
    %v988 = vadd.f32 %v985, %v987
    %v989 = vtanh.pop %v988
    %v990 = vmul.f32 %v981, %v989
    %v992 = vrot.slane %v990, 3
    %994 = vmatprep.subr.mxu0 %v221
    %995 = vmatpush1.msra.mxu0 %v220
    %996 = vmatprep.subr.mxu0 %v225
    %997 = vmatpush1.msra.mxu0 %v224
    %998 = vmatprep.subr.mxu0 %v229
    %999 = vmatpush1.msra.mxu0 %v228
    %1000 = vmatprep.subr.mxu0 %v233
    %1001 = vmatpush1.msra.mxu0 %v232
    %1002 = vmatprep.subr.mxu0 %v237
    %1003 = vmatpush1.msra.mxu0 %v236
    %1004 = vmatprep.subr.mxu0 %v241
    %1005 = vmatpush1.msra.mxu0 %v240
    %1006 = vmatprep.subr.mxu0 %v245
    %1007 = vmatpush1.msra.mxu0 %v244
    %1008 = vmatprep.subr.mxu0 %v249
    %1009 = vmatpush1.msra.mxu0 %v248
    %1010 = vmatprep.subr.mxu0 %v253
    %1011 = vmatpush1.msra.mxu0 %v252
    %1012 = vmatprep.subr.mxu0 %v257
    %1013 = vmatpush1.msra.mxu0 %v256
    %1014 = vmatprep.subr.mxu0 %v261
    %1015 = vmatpush1.msra.mxu0 %v260
    %1016 = vmatprep.subr.mxu0 %v265
    %1017 = vmatpush1.msra.mxu0 %v264
    %1018 = vmatprep.subr.mxu0 %v269
    %1019 = vmatpush1.msra.mxu0 %v268
    %1020 = vmatprep.subr.mxu0 %v273
    %1021 = vmatpush1.msra.mxu0 %v272
    %1022 = vmatprep.subr.mxu0 %v277
    %1023 = vmatpush1.msra.mxu0 %v276
    %1024 = vmatprep.subr.mxu0 %v281
    %1025 = vmatpush1.msra.mxu0 %v280
    %1026 = vmatprep.subr.mxu0 0.0
    %1027 = vmatpush1.msra.mxu0 0.0
    %1028 = vmatprep.subr.mxu0 0.0
    %1029 = vmatpush1.msra.mxu0 0.0
    %1030 = vmatprep.subr.mxu0 0.0
    %1031 = vmatpush1.msra.mxu0 0.0
    %1032 = vmatprep.subr.mxu0 0.0
    %1033 = vmatpush1.msra.mxu0 0.0
    %1034 = vmatprep.subr.mxu0 0.0
    %1035 = vmatpush1.msra.mxu0 0.0
    %1036 = vmatprep.subr.mxu0 0.0
    %1037 = vmatpush1.msra.mxu0 0.0
    %1038 = vmatprep.subr.mxu0 0.0
    %1039 = vmatpush1.msra.mxu0 0.0
    %1040 = vmatprep.subr.mxu0 0.0
    %1041 = vmatpush1.msra.mxu0 0.0
    %1042 = vmatprep.subr.mxu0 0.0
    %1043 = vmatpush1.msra.mxu0 0.0
    %1044 = vmatprep.subr.mxu0 0.0
    %1045 = vmatpush1.msra.mxu0 0.0
    %1046 = vmatprep.subr.mxu0 0.0
    %1047 = vmatpush1.msra.mxu0 0.0
    %1048 = vmatprep.subr.mxu0 0.0
    %1049 = vmatpush1.msra.mxu0 0.0
    %1050 = vmatprep.subr.mxu0 0.0
    %1051 = vmatpush1.msra.mxu0 0.0
    %1052 = vmatprep.subr.mxu0 0.0
    %1053 = vmatpush1.msra.mxu0 0.0
    %1054 = vmatprep.subr.mxu0 0.0
    %1055 = vmatpush1.msra.mxu0 0.0
    %1056 = vmatprep.subr.mxu0 0.0
    %1057 = vmatpush1.msra.mxu0 0.0
    %1058 = vmatprep.mubr.f32.mxu0 0.0
    %1059 = vmatmul.mubr.f32.gmra.mrb[0].mxu0 %v992
    %v1060 = vpop.f32.mrb[0].mxu0
    %v1061 = vadd.f32 0.0, %v1060
    %v1062 = vpop.f32.mrb[0].mxu0
    %v1063 = vadd.f32 0.0, %v1062
    %1064 = vdwg.mxu0
    %1065 = vmatprep.subr.mxu0 %v223
    %1066 = vmatpush1.msra.mxu0 %v222
    %1067 = vmatprep.subr.mxu0 %v227
    %1068 = vmatpush1.msra.mxu0 %v226
    %1069 = vmatprep.subr.mxu0 %v231
    %1070 = vmatpush1.msra.mxu0 %v230
    %1071 = vmatprep.subr.mxu0 %v235
    %1072 = vmatpush1.msra.mxu0 %v234
    %1073 = vmatprep.subr.mxu0 %v239
    %1074 = vmatpush1.msra.mxu0 %v238
    %1075 = vmatprep.subr.mxu0 %v243
    %1076 = vmatpush1.msra.mxu0 %v242
    %1077 = vmatprep.subr.mxu0 %v247
    %1078 = vmatpush1.msra.mxu0 %v246
    %1079 = vmatprep.subr.mxu0 %v251
    %1080 = vmatpush1.msra.mxu0 %v250
    %1081 = vmatprep.subr.mxu0 %v255
    %1082 = vmatpush1.msra.mxu0 %v254
    %1083 = vmatprep.subr.mxu0 %v259
    %1084 = vmatpush1.msra.mxu0 %v258
    %1085 = vmatprep.subr.mxu0 %v263
    %1086 = vmatpush1.msra.mxu0 %v262
    %1087 = vmatprep.subr.mxu0 %v267
    %1088 = vmatpush1.msra.mxu0 %v266
    %1089 = vmatprep.subr.mxu0 %v271
    %1090 = vmatpush1.msra.mxu0 %v270
    %1091 = vmatprep.subr.mxu0 %v275
    %1092 = vmatpush1.msra.mxu0 %v274
    %1093 = vmatprep.subr.mxu0 %v279
    %1094 = vmatpush1.msra.mxu0 %v278
    %1095 = vmatprep.subr.mxu0 %v283
    %1096 = vmatpush1.msra.mxu0 %v282
    %1097 = vmatprep.subr.mxu0 0.0
    %1098 = vmatpush1.msra.mxu0 0.0
    %1099 = vmatprep.subr.mxu0 0.0
    %1100 = vmatpush1.msra.mxu0 0.0
    %1101 = vmatprep.subr.mxu0 0.0
    %1102 = vmatpush1.msra.mxu0 0.0
    %1103 = vmatprep.subr.mxu0 0.0
    %1104 = vmatpush1.msra.mxu0 0.0
    %1105 = vmatprep.subr.mxu0 0.0
    %1106 = vmatpush1.msra.mxu0 0.0
    %1107 = vmatprep.subr.mxu0 0.0
    %1108 = vmatpush1.msra.mxu0 0.0
    %1109 = vmatprep.subr.mxu0 0.0
    %1110 = vmatpush1.msra.mxu0 0.0
    %1111 = vmatprep.subr.mxu0 0.0
    %1112 = vmatpush1.msra.mxu0 0.0
    %1113 = vmatprep.subr.mxu0 0.0
    %1114 = vmatpush1.msra.mxu0 0.0
    %1115 = vmatprep.subr.mxu0 0.0
    %1116 = vmatpush1.msra.mxu0 0.0
    %1117 = vmatprep.subr.mxu0 0.0
    %1118 = vmatpush1.msra.mxu0 0.0
    %1119 = vmatprep.subr.mxu0 0.0
    %1120 = vmatpush1.msra.mxu0 0.0
    %1121 = vmatprep.subr.mxu0 0.0
    %1122 = vmatpush1.msra.mxu0 0.0
    %1123 = vmatprep.subr.mxu0 0.0
    %1124 = vmatpush1.msra.mxu0 0.0
    %1125 = vmatprep.subr.mxu0 0.0
    %1126 = vmatpush1.msra.mxu0 0.0
    %1127 = vmatprep.subr.mxu0 0.0
    %1128 = vmatpush1.msra.mxu0 0.0
    %1129 = vmatprep.mubr.f32.mxu0 0.0
    %1130 = vmatmul.mubr.f32.gmra.mrb[0].mxu0 %v992
    %v1131 = vpop.f32.mrb[0].mxu0
    %v1132 = vadd.f32 0.0, %v1131
    %v1133 = vpop.f32.mrb[0].mxu0
    %v1134 = vadd.f32 0.0, %v1133
    %1135 = vdwg.mxu0
    %v1140 = vrot.slane %v1061, 4
    %v1141 = vrot.slane %v1063, 4
    %v1142 = vrot.slane %v1132, 4
    %v1143 = vrot.slane %v1134, 4
    %v1148 = vadd.f32 %v145, %v1140
    %v1149 = vadd.f32 %v147, %v1141
    %v1150 = vadd.f32 %v216, %v1142
    %v1151 = vadd.f32 %v218, %v1143
    %v1152 = vmul.f32 %v1148, 0.5
    %v1153 = vmul.f32 %v1149, 0.5
    %v1154 = vmul.f32 %v1150, 0.5
    %v1155 = vtanh.pop %v1152
    %v1156 = vtanh.pop %v1153
    %v1157 = vtanh.pop %v1154
    %v1158 = vmul.f32 %v1155, 0.5
    %v1159 = vmul.f32 %v1156, 0.5
    %v1160 = vmul.f32 %v1157, 0.5
    %v1161 = vadd.f32 %v1158, 0.5
    %v1162 = vadd.f32 %v1159, 0.5
    %v1163 = vadd.f32 %v1160, 0.5
    %v1165 = vrot.slane %v988, 7
    %v1167 = vmul.f32 %v1162, %v1165
    %v1168 = vtanh.pop %v1151
    %v1169 = vmul.f32 %v1161, %v1168
    %v1170 = vadd.f32 %v1167, %v1169
    %v1171 = vtanh.pop %v1170
    %v1172 = vmul.f32 %v1163, %v1171
    %v1174 = vrot.slane %v1172, 4
    %1176 = vmatprep.subr.mxu0 %v221
    %1177 = vmatpush1.msra.mxu0 %v220
    %1178 = vmatprep.subr.mxu0 %v225
    %1179 = vmatpush1.msra.mxu0 %v224
    %1180 = vmatprep.subr.mxu0 %v229
    %1181 = vmatpush1.msra.mxu0 %v228
    %1182 = vmatprep.subr.mxu0 %v233
    %1183 = vmatpush1.msra.mxu0 %v232
    %1184 = vmatprep.subr.mxu0 %v237
    %1185 = vmatpush1.msra.mxu0 %v236
    %1186 = vmatprep.subr.mxu0 %v241
    %1187 = vmatpush1.msra.mxu0 %v240
    %1188 = vmatprep.subr.mxu0 %v245
    %1189 = vmatpush1.msra.mxu0 %v244
    %1190 = vmatprep.subr.mxu0 %v249
    %1191 = vmatpush1.msra.mxu0 %v248
    %1192 = vmatprep.subr.mxu0 %v253
    %1193 = vmatpush1.msra.mxu0 %v252
    %1194 = vmatprep.subr.mxu0 %v257
    %1195 = vmatpush1.msra.mxu0 %v256
    %1196 = vmatprep.subr.mxu0 %v261
    %1197 = vmatpush1.msra.mxu0 %v260
    %1198 = vmatprep.subr.mxu0 %v265
    %1199 = vmatpush1.msra.mxu0 %v264
    %1200 = vmatprep.subr.mxu0 %v269
    %1201 = vmatpush1.msra.mxu0 %v268
    %1202 = vmatprep.subr.mxu0 %v273
    %1203 = vmatpush1.msra.mxu0 %v272
    %1204 = vmatprep.subr.mxu0 %v277
    %1205 = vmatpush1.msra.mxu0 %v276
    %1206 = vmatprep.subr.mxu0 %v281
    %1207 = vmatpush1.msra.mxu0 %v280
    %1208 = vmatprep.subr.mxu0 0.0
    %1209 = vmatpush1.msra.mxu0 0.0
    %1210 = vmatprep.subr.mxu0 0.0
    %1211 = vmatpush1.msra.mxu0 0.0
    %1212 = vmatprep.subr.mxu0 0.0
    %1213 = vmatpush1.msra.mxu0 0.0
    %1214 = vmatprep.subr.mxu0 0.0
    %1215 = vmatpush1.msra.mxu0 0.0
    %1216 = vmatprep.subr.mxu0 0.0
    %1217 = vmatpush1.msra.mxu0 0.0
    %1218 = vmatprep.subr.mxu0 0.0
    %1219 = vmatpush1.msra.mxu0 0.0
    %1220 = vmatprep.subr.mxu0 0.0
    %1221 = vmatpush1.msra.mxu0 0.0
    %1222 = vmatprep.subr.mxu0 0.0
    %1223 = vmatpush1.msra.mxu0 0.0
    %1224 = vmatprep.subr.mxu0 0.0
    %1225 = vmatpush1.msra.mxu0 0.0
    %1226 = vmatprep.subr.mxu0 0.0
    %1227 = vmatpush1.msra.mxu0 0.0
    %1228 = vmatprep.subr.mxu0 0.0
    %1229 = vmatpush1.msra.mxu0 0.0
    %1230 = vmatprep.subr.mxu0 0.0
    %1231 = vmatpush1.msra.mxu0 0.0
    %1232 = vmatprep.subr.mxu0 0.0
    %1233 = vmatpush1.msra.mxu0 0.0
    %1234 = vmatprep.subr.mxu0 0.0
    %1235 = vmatpush1.msra.mxu0 0.0
    %1236 = vmatprep.subr.mxu0 0.0
    %1237 = vmatpush1.msra.mxu0 0.0
    %1238 = vmatprep.subr.mxu0 0.0
    %1239 = vmatpush1.msra.mxu0 0.0
    %1240 = vmatprep.mubr.f32.mxu0 0.0
    %1241 = vmatmul.mubr.f32.gmra.mrb[0].mxu0 %v1174
    %v1242 = vpop.f32.mrb[0].mxu0
    %v1243 = vadd.f32 0.0, %v1242
    %v1244 = vpop.f32.mrb[0].mxu0
    %v1245 = vadd.f32 0.0, %v1244
    %1246 = vdwg.mxu0
    %1247 = vmatprep.subr.mxu0 %v223
    %1248 = vmatpush1.msra.mxu0 %v222
    %1249 = vmatprep.subr.mxu0 %v227
    %1250 = vmatpush1.msra.mxu0 %v226
    %1251 = vmatprep.subr.mxu0 %v231
    %1252 = vmatpush1.msra.mxu0 %v230
    %1253 = vmatprep.subr.mxu0 %v235
    %1254 = vmatpush1.msra.mxu0 %v234
    %1255 = vmatprep.subr.mxu0 %v239
    %1256 = vmatpush1.msra.mxu0 %v238
    %1257 = vmatprep.subr.mxu0 %v243
    %1258 = vmatpush1.msra.mxu0 %v242
    %1259 = vmatprep.subr.mxu0 %v247
    %1260 = vmatpush1.msra.mxu0 %v246
    %1261 = vmatprep.subr.mxu0 %v251
    %1262 = vmatpush1.msra.mxu0 %v250
    %1263 = vmatprep.subr.mxu0 %v255
    %1264 = vmatpush1.msra.mxu0 %v254
    %1265 = vmatprep.subr.mxu0 %v259
    %1266 = vmatpush1.msra.mxu0 %v258
    %1267 = vmatprep.subr.mxu0 %v263
    %1268 = vmatpush1.msra.mxu0 %v262
    %1269 = vmatprep.subr.mxu0 %v267
    %1270 = vmatpush1.msra.mxu0 %v266
    %1271 = vmatprep.subr.mxu0 %v271
    %1272 = vmatpush1.msra.mxu0 %v270
    %1273 = vmatprep.subr.mxu0 %v275
    %1274 = vmatpush1.msra.mxu0 %v274
    %1275 = vmatprep.subr.mxu0 %v279
    %1276 = vmatpush1.msra.mxu0 %v278
    %1277 = vmatprep.subr.mxu0 %v283
    %1278 = vmatpush1.msra.mxu0 %v282
    %1279 = vmatprep.subr.mxu0 0.0
    %1280 = vmatpush1.msra.mxu0 0.0
    %1281 = vmatprep.subr.mxu0 0.0
    %1282 = vmatpush1.msra.mxu0 0.0
    %1283 = vmatprep.subr.mxu0 0.0
    %1284 = vmatpush1.msra.mxu0 0.0
    %1285 = vmatprep.subr.mxu0 0.0
    %1286 = vmatpush1.msra.mxu0 0.0
    %1287 = vmatprep.subr.mxu0 0.0
    %1288 = vmatpush1.msra.mxu0 0.0
    %1289 = vmatprep.subr.mxu0 0.0
    %1290 = vmatpush1.msra.mxu0 0.0
    %1291 = vmatprep.subr.mxu0 0.0
    %1292 = vmatpush1.msra.mxu0 0.0
    %1293 = vmatprep.subr.mxu0 0.0
    %1294 = vmatpush1.msra.mxu0 0.0
    %1295 = vmatprep.subr.mxu0 0.0
    %1296 = vmatpush1.msra.mxu0 0.0
    %1297 = vmatprep.subr.mxu0 0.0
    %1298 = vmatpush1.msra.mxu0 0.0
    %1299 = vmatprep.subr.mxu0 0.0
    %1300 = vmatpush1.msra.mxu0 0.0
    %1301 = vmatprep.subr.mxu0 0.0
    %1302 = vmatpush1.msra.mxu0 0.0
    %1303 = vmatprep.subr.mxu0 0.0
    %1304 = vmatpush1.msra.mxu0 0.0
    %1305 = vmatprep.subr.mxu0 0.0
    %1306 = vmatpush1.msra.mxu0 0.0
    %1307 = vmatprep.subr.mxu0 0.0
    %1308 = vmatpush1.msra.mxu0 0.0
    %1309 = vmatprep.subr.mxu0 0.0
    %1310 = vmatpush1.msra.mxu0 0.0
    %1311 = vmatprep.mubr.f32.mxu0 0.0
    %1312 = vmatmul.mubr.f32.gmra.mrb[0].mxu0 %v1174
    %v1313 = vpop.f32.mrb[0].mxu0
    %v1314 = vadd.f32 0.0, %v1313
    %v1315 = vpop.f32.mrb[0].mxu0
    %v1316 = vadd.f32 0.0, %v1315
    %1317 = vdwg.mxu0
    %v1322 = vrot.slane %v1243, 3
    %v1323 = vrot.slane %v1245, 3
    %v1324 = vrot.slane %v1314, 3
    %v1325 = vrot.slane %v1316, 3
    %v1330 = vadd.f32 %v145, %v1322
    %v1331 = vadd.f32 %v147, %v1323
    %v1332 = vadd.f32 %v216, %v1324
    %v1333 = vadd.f32 %v218, %v1325
    %v1334 = vmul.f32 %v1330, 0.5
    %v1335 = vmul.f32 %v1331, 0.5
    %v1336 = vmul.f32 %v1332, 0.5
    %v1337 = vtanh.pop %v1334
    %v1338 = vtanh.pop %v1335
    %v1339 = vtanh.pop %v1336
    %v1340 = vmul.f32 %v1337, 0.5
    %v1341 = vmul.f32 %v1338, 0.5
    %v1342 = vmul.f32 %v1339, 0.5
    %v1343 = vadd.f32 %v1340, 0.5
    %v1344 = vadd.f32 %v1341, 0.5
    %v1345 = vadd.f32 %v1342, 0.5
    %v1347 = vrot.slane %v1170, 7
    %v1349 = vmul.f32 %v1344, %v1347
    %v1350 = vtanh.pop %v1333
    %v1351 = vmul.f32 %v1343, %v1350
    %v1352 = vadd.f32 %v1349, %v1351
    %v1353 = vtanh.pop %v1352
    %v1354 = vmul.f32 %v1345, %v1353
    %v1356 = vrot.slane %v1354, 5
    %1358 = vmatprep.subr.mxu0 %v221
    %1359 = vmatpush1.msra.mxu0 %v220
    %1360 = vmatprep.subr.mxu0 %v225
    %1361 = vmatpush1.msra.mxu0 %v224
    %1362 = vmatprep.subr.mxu0 %v229
    %1363 = vmatpush1.msra.mxu0 %v228
    %1364 = vmatprep.subr.mxu0 %v233
    %1365 = vmatpush1.msra.mxu0 %v232
    %1366 = vmatprep.subr.mxu0 %v237
    %1367 = vmatpush1.msra.mxu0 %v236
    %1368 = vmatprep.subr.mxu0 %v241
    %1369 = vmatpush1.msra.mxu0 %v240
    %1370 = vmatprep.subr.mxu0 %v245
    %1371 = vmatpush1.msra.mxu0 %v244
    %1372 = vmatprep.subr.mxu0 %v249
    %1373 = vmatpush1.msra.mxu0 %v248
    %1374 = vmatprep.subr.mxu0 %v253
    %1375 = vmatpush1.msra.mxu0 %v252
    %1376 = vmatprep.subr.mxu0 %v257
    %1377 = vmatpush1.msra.mxu0 %v256
    %1378 = vmatprep.subr.mxu0 %v261
    %1379 = vmatpush1.msra.mxu0 %v260
    %1380 = vmatprep.subr.mxu0 %v265
    %1381 = vmatpush1.msra.mxu0 %v264
    %1382 = vmatprep.subr.mxu0 %v269
    %1383 = vmatpush1.msra.mxu0 %v268
    %1384 = vmatprep.subr.mxu0 %v273
    %1385 = vmatpush1.msra.mxu0 %v272
    %1386 = vmatprep.subr.mxu0 %v277
    %1387 = vmatpush1.msra.mxu0 %v276
    %1388 = vmatprep.subr.mxu0 %v281
    %1389 = vmatpush1.msra.mxu0 %v280
    %1390 = vmatprep.subr.mxu0 0.0
    %1391 = vmatpush1.msra.mxu0 0.0
    %1392 = vmatprep.subr.mxu0 0.0
    %1393 = vmatpush1.msra.mxu0 0.0
    %1394 = vmatprep.subr.mxu0 0.0
    %1395 = vmatpush1.msra.mxu0 0.0
    %1396 = vmatprep.subr.mxu0 0.0
    %1397 = vmatpush1.msra.mxu0 0.0
    %1398 = vmatprep.subr.mxu0 0.0
    %1399 = vmatpush1.msra.mxu0 0.0
    %1400 = vmatprep.subr.mxu0 0.0
    %1401 = vmatpush1.msra.mxu0 0.0
    %1402 = vmatprep.subr.mxu0 0.0
    %1403 = vmatpush1.msra.mxu0 0.0
    %1404 = vmatprep.subr.mxu0 0.0
    %1405 = vmatpush1.msra.mxu0 0.0
    %1406 = vmatprep.subr.mxu0 0.0
    %1407 = vmatpush1.msra.mxu0 0.0
    %1408 = vmatprep.subr.mxu0 0.0
    %1409 = vmatpush1.msra.mxu0 0.0
    %1410 = vmatprep.subr.mxu0 0.0
    %1411 = vmatpush1.msra.mxu0 0.0
    %1412 = vmatprep.subr.mxu0 0.0
    %1413 = vmatpush1.msra.mxu0 0.0
    %1414 = vmatprep.subr.mxu0 0.0
    %1415 = vmatpush1.msra.mxu0 0.0
    %1416 = vmatprep.subr.mxu0 0.0
    %1417 = vmatpush1.msra.mxu0 0.0
    %1418 = vmatprep.subr.mxu0 0.0
    %1419 = vmatpush1.msra.mxu0 0.0
    %1420 = vmatprep.subr.mxu0 0.0
    %1421 = vmatpush1.msra.mxu0 0.0
    %1422 = vmatprep.mubr.f32.mxu0 0.0
    %1423 = vmatmul.mubr.f32.gmra.mrb[0].mxu0 %v1356
    %v1424 = vpop.f32.mrb[0].mxu0
    %v1425 = vadd.f32 0.0, %v1424
    %v1426 = vpop.f32.mrb[0].mxu0
    %v1427 = vadd.f32 0.0, %v1426
    %1428 = vdwg.mxu0
    %1429 = vmatprep.subr.mxu0 %v223
    %1430 = vmatpush1.msra.mxu0 %v222
    %1431 = vmatprep.subr.mxu0 %v227
    %1432 = vmatpush1.msra.mxu0 %v226
    %1433 = vmatprep.subr.mxu0 %v231
    %1434 = vmatpush1.msra.mxu0 %v230
    %1435 = vmatprep.subr.mxu0 %v235
    %1436 = vmatpush1.msra.mxu0 %v234
    %1437 = vmatprep.subr.mxu0 %v239
    %1438 = vmatpush1.msra.mxu0 %v238
    %1439 = vmatprep.subr.mxu0 %v243
    %1440 = vmatpush1.msra.mxu0 %v242
    %1441 = vmatprep.subr.mxu0 %v247
    %1442 = vmatpush1.msra.mxu0 %v246
    %1443 = vmatprep.subr.mxu0 %v251
    %1444 = vmatpush1.msra.mxu0 %v250
    %1445 = vmatprep.subr.mxu0 %v255
    %1446 = vmatpush1.msra.mxu0 %v254
    %1447 = vmatprep.subr.mxu0 %v259
    %1448 = vmatpush1.msra.mxu0 %v258
    %1449 = vmatprep.subr.mxu0 %v263
    %1450 = vmatpush1.msra.mxu0 %v262
    %1451 = vmatprep.subr.mxu0 %v267
    %1452 = vmatpush1.msra.mxu0 %v266
    %1453 = vmatprep.subr.mxu0 %v271
    %1454 = vmatpush1.msra.mxu0 %v270
    %1455 = vmatprep.subr.mxu0 %v275
    %1456 = vmatpush1.msra.mxu0 %v274
    %1457 = vmatprep.subr.mxu0 %v279
    %1458 = vmatpush1.msra.mxu0 %v278
    %1459 = vmatprep.subr.mxu0 %v283
    %1460 = vmatpush1.msra.mxu0 %v282
    %1461 = vmatprep.subr.mxu0 0.0
    %1462 = vmatpush1.msra.mxu0 0.0
    %1463 = vmatprep.subr.mxu0 0.0
    %1464 = vmatpush1.msra.mxu0 0.0
    %1465 = vmatprep.subr.mxu0 0.0
    %1466 = vmatpush1.msra.mxu0 0.0
    %1467 = vmatprep.subr.mxu0 0.0
    %1468 = vmatpush1.msra.mxu0 0.0
    %1469 = vmatprep.subr.mxu0 0.0
    %1470 = vmatpush1.msra.mxu0 0.0
    %1471 = vmatprep.subr.mxu0 0.0
    %1472 = vmatpush1.msra.mxu0 0.0
    %1473 = vmatprep.subr.mxu0 0.0
    %1474 = vmatpush1.msra.mxu0 0.0
    %1475 = vmatprep.subr.mxu0 0.0
    %1476 = vmatpush1.msra.mxu0 0.0
    %1477 = vmatprep.subr.mxu0 0.0
    %1478 = vmatpush1.msra.mxu0 0.0
    %1479 = vmatprep.subr.mxu0 0.0
    %1480 = vmatpush1.msra.mxu0 0.0
    %1481 = vmatprep.subr.mxu0 0.0
    %1482 = vmatpush1.msra.mxu0 0.0
    %1483 = vmatprep.subr.mxu0 0.0
    %1484 = vmatpush1.msra.mxu0 0.0
    %1485 = vmatprep.subr.mxu0 0.0
    %1486 = vmatpush1.msra.mxu0 0.0
    %1487 = vmatprep.subr.mxu0 0.0
    %1488 = vmatpush1.msra.mxu0 0.0
    %1489 = vmatprep.subr.mxu0 0.0
    %1490 = vmatpush1.msra.mxu0 0.0
    %1491 = vmatprep.subr.mxu0 0.0
    %1492 = vmatpush1.msra.mxu0 0.0
    %1493 = vmatprep.mubr.f32.mxu0 0.0
    %1494 = vmatmul.mubr.f32.gmra.mrb[0].mxu0 %v1356
    %v1495 = vpop.f32.mrb[0].mxu0
    %v1496 = vadd.f32 0.0, %v1495
    %v1497 = vpop.f32.mrb[0].mxu0
    %v1498 = vadd.f32 0.0, %v1497
    %1499 = vdwg.mxu0
    %v1504 = vrot.slane %v1425, 2
    %v1505 = vrot.slane %v1427, 2
    %v1506 = vrot.slane %v1496, 2
    %v1507 = vrot.slane %v1498, 2
    %v1512 = vadd.f32 %v145, %v1504
    %v1513 = vadd.f32 %v147, %v1505
    %v1514 = vadd.f32 %v216, %v1506
    %v1515 = vadd.f32 %v218, %v1507
    %v1516 = vmul.f32 %v1512, 0.5
    %v1517 = vmul.f32 %v1513, 0.5
    %v1518 = vmul.f32 %v1514, 0.5
    %v1519 = vtanh.pop %v1516
    %v1520 = vtanh.pop %v1517
    %v1521 = vtanh.pop %v1518
    %v1522 = vmul.f32 %v1519, 0.5
    %v1523 = vmul.f32 %v1520, 0.5
    %v1524 = vmul.f32 %v1521, 0.5
    %v1525 = vadd.f32 %v1522, 0.5
    %v1526 = vadd.f32 %v1523, 0.5
    %v1527 = vadd.f32 %v1524, 0.5
    %v1529 = vrot.slane %v1352, 7
    %v1531 = vmul.f32 %v1526, %v1529
    %v1532 = vtanh.pop %v1515
    %v1533 = vmul.f32 %v1525, %v1532
    %v1534 = vadd.f32 %v1531, %v1533
    %v1535 = vtanh.pop %v1534
    %v1536 = vmul.f32 %v1527, %v1535
    %v1538 = vrot.slane %v1536, 6
    %1540 = vmatprep.subr.mxu0 %v221
    %1541 = vmatpush1.msra.mxu0 %v220
    %1542 = vmatprep.subr.mxu0 %v225
    %1543 = vmatpush1.msra.mxu0 %v224
    %1544 = vmatprep.subr.mxu0 %v229
    %1545 = vmatpush1.msra.mxu0 %v228
    %1546 = vmatprep.subr.mxu0 %v233
    %1547 = vmatpush1.msra.mxu0 %v232
    %1548 = vmatprep.subr.mxu0 %v237
    %1549 = vmatpush1.msra.mxu0 %v236
    %1550 = vmatprep.subr.mxu0 %v241
    %1551 = vmatpush1.msra.mxu0 %v240
    %1552 = vmatprep.subr.mxu0 %v245
    %1553 = vmatpush1.msra.mxu0 %v244
    %1554 = vmatprep.subr.mxu0 %v249
    %1555 = vmatpush1.msra.mxu0 %v248
    %1556 = vmatprep.subr.mxu0 %v253
    %1557 = vmatpush1.msra.mxu0 %v252
    %1558 = vmatprep.subr.mxu0 %v257
    %1559 = vmatpush1.msra.mxu0 %v256
    %1560 = vmatprep.subr.mxu0 %v261
    %1561 = vmatpush1.msra.mxu0 %v260
    %1562 = vmatprep.subr.mxu0 %v265
    %1563 = vmatpush1.msra.mxu0 %v264
    %1564 = vmatprep.subr.mxu0 %v269
    %1565 = vmatpush1.msra.mxu0 %v268
    %1566 = vmatprep.subr.mxu0 %v273
    %1567 = vmatpush1.msra.mxu0 %v272
    %1568 = vmatprep.subr.mxu0 %v277
    %1569 = vmatpush1.msra.mxu0 %v276
    %1570 = vmatprep.subr.mxu0 %v281
    %1571 = vmatpush1.msra.mxu0 %v280
    %1572 = vmatprep.subr.mxu0 0.0
    %1573 = vmatpush1.msra.mxu0 0.0
    %1574 = vmatprep.subr.mxu0 0.0
    %1575 = vmatpush1.msra.mxu0 0.0
    %1576 = vmatprep.subr.mxu0 0.0
    %1577 = vmatpush1.msra.mxu0 0.0
    %1578 = vmatprep.subr.mxu0 0.0
    %1579 = vmatpush1.msra.mxu0 0.0
    %1580 = vmatprep.subr.mxu0 0.0
    %1581 = vmatpush1.msra.mxu0 0.0
    %1582 = vmatprep.subr.mxu0 0.0
    %1583 = vmatpush1.msra.mxu0 0.0
    %1584 = vmatprep.subr.mxu0 0.0
    %1585 = vmatpush1.msra.mxu0 0.0
    %1586 = vmatprep.subr.mxu0 0.0
    %1587 = vmatpush1.msra.mxu0 0.0
    %1588 = vmatprep.subr.mxu0 0.0
    %1589 = vmatpush1.msra.mxu0 0.0
    %1590 = vmatprep.subr.mxu0 0.0
    %1591 = vmatpush1.msra.mxu0 0.0
    %1592 = vmatprep.subr.mxu0 0.0
    %1593 = vmatpush1.msra.mxu0 0.0
    %1594 = vmatprep.subr.mxu0 0.0
    %1595 = vmatpush1.msra.mxu0 0.0
    %1596 = vmatprep.subr.mxu0 0.0
    %1597 = vmatpush1.msra.mxu0 0.0
    %1598 = vmatprep.subr.mxu0 0.0
    %1599 = vmatpush1.msra.mxu0 0.0
    %1600 = vmatprep.subr.mxu0 0.0
    %1601 = vmatpush1.msra.mxu0 0.0
    %1602 = vmatprep.subr.mxu0 0.0
    %1603 = vmatpush1.msra.mxu0 0.0
    %1604 = vmatprep.mubr.f32.mxu0 0.0
    %1605 = vmatmul.mubr.f32.gmra.mrb[0].mxu0 %v1538
    %v1606 = vpop.f32.mrb[0].mxu0
    %v1607 = vadd.f32 0.0, %v1606
    %v1608 = vpop.f32.mrb[0].mxu0
    %v1609 = vadd.f32 0.0, %v1608
    %1610 = vdwg.mxu0
    %1611 = vmatprep.subr.mxu0 %v223
    %1612 = vmatpush1.msra.mxu0 %v222
    %1613 = vmatprep.subr.mxu0 %v227
    %1614 = vmatpush1.msra.mxu0 %v226
    %1615 = vmatprep.subr.mxu0 %v231
    %1616 = vmatpush1.msra.mxu0 %v230
    %1617 = vmatprep.subr.mxu0 %v235
    %1618 = vmatpush1.msra.mxu0 %v234
    %1619 = vmatprep.subr.mxu0 %v239
    %1620 = vmatpush1.msra.mxu0 %v238
    %1621 = vmatprep.subr.mxu0 %v243
    %1622 = vmatpush1.msra.mxu0 %v242
    %1623 = vmatprep.subr.mxu0 %v247
    %1624 = vmatpush1.msra.mxu0 %v246
    %1625 = vmatprep.subr.mxu0 %v251
    %1626 = vmatpush1.msra.mxu0 %v250
    %1627 = vmatprep.subr.mxu0 %v255
    %1628 = vmatpush1.msra.mxu0 %v254
    %1629 = vmatprep.subr.mxu0 %v259
    %1630 = vmatpush1.msra.mxu0 %v258
    %1631 = vmatprep.subr.mxu0 %v263
    %1632 = vmatpush1.msra.mxu0 %v262
    %1633 = vmatprep.subr.mxu0 %v267
    %1634 = vmatpush1.msra.mxu0 %v266
    %1635 = vmatprep.subr.mxu0 %v271
    %1636 = vmatpush1.msra.mxu0 %v270
    %1637 = vmatprep.subr.mxu0 %v275
    %1638 = vmatpush1.msra.mxu0 %v274
    %1639 = vmatprep.subr.mxu0 %v279
    %1640 = vmatpush1.msra.mxu0 %v278
    %1641 = vmatprep.subr.mxu0 %v283
    %1642 = vmatpush1.msra.mxu0 %v282
    %1643 = vmatprep.subr.mxu0 0.0
    %1644 = vmatpush1.msra.mxu0 0.0
    %1645 = vmatprep.subr.mxu0 0.0
    %1646 = vmatpush1.msra.mxu0 0.0
    %1647 = vmatprep.subr.mxu0 0.0
    %1648 = vmatpush1.msra.mxu0 0.0
    %1649 = vmatprep.subr.mxu0 0.0
    %1650 = vmatpush1.msra.mxu0 0.0
    %1651 = vmatprep.subr.mxu0 0.0
    %1652 = vmatpush1.msra.mxu0 0.0
    %1653 = vmatprep.subr.mxu0 0.0
    %1654 = vmatpush1.msra.mxu0 0.0
    %1655 = vmatprep.subr.mxu0 0.0
    %1656 = vmatpush1.msra.mxu0 0.0
    %1657 = vmatprep.subr.mxu0 0.0
    %1658 = vmatpush1.msra.mxu0 0.0
    %1659 = vmatprep.subr.mxu0 0.0
    %1660 = vmatpush1.msra.mxu0 0.0
    %1661 = vmatprep.subr.mxu0 0.0
    %1662 = vmatpush1.msra.mxu0 0.0
    %1663 = vmatprep.subr.mxu0 0.0
    %1664 = vmatpush1.msra.mxu0 0.0
    %1665 = vmatprep.subr.mxu0 0.0
    %1666 = vmatpush1.msra.mxu0 0.0
    %1667 = vmatprep.subr.mxu0 0.0
    %1668 = vmatpush1.msra.mxu0 0.0
    %1669 = vmatprep.subr.mxu0 0.0
    %1670 = vmatpush1.msra.mxu0 0.0
    %1671 = vmatprep.subr.mxu0 0.0
    %1672 = vmatpush1.msra.mxu0 0.0
    %1673 = vmatprep.subr.mxu0 0.0
    %1674 = vmatpush1.msra.mxu0 0.0
    %1675 = vmatprep.mubr.f32.mxu0 0.0
    %1676 = vmatmul.mubr.f32.gmra.mrb[0].mxu0 %v1538
    %v1677 = vpop.f32.mrb[0].mxu0
    %v1678 = vadd.f32 0.0, %v1677
    %v1679 = vpop.f32.mrb[0].mxu0
    %v1680 = vadd.f32 0.0, %v1679
    %1681 = vdwg.mxu0
    %v1686 = vrot.slane %v1607, 1
    %v1687 = vrot.slane %v1609, 1
    %v1688 = vrot.slane %v1678, 1
    %v1689 = vrot.slane %v1680, 1
    %v1694 = vadd.f32 %v145, %v1686
    %v1695 = vadd.f32 %v147, %v1687
    %v1696 = vadd.f32 %v216, %v1688
    %v1697 = vadd.f32 %v218, %v1689
    %v1698 = vmul.f32 %v1694, 0.5
    %v1699 = vmul.f32 %v1695, 0.5
    %v1700 = vmul.f32 %v1696, 0.5
    %v1701 = vtanh.pop %v1698
    %v1702 = vtanh.pop %v1699
    %v1703 = vtanh.pop %v1700
    %v1704 = vmul.f32 %v1701, 0.5
    %v1705 = vmul.f32 %v1702, 0.5
    %v1706 = vmul.f32 %v1703, 0.5
    %v1707 = vadd.f32 %v1704, 0.5
    %v1708 = vadd.f32 %v1705, 0.5
    %v1709 = vadd.f32 %v1706, 0.5
    %v1711 = vrot.slane %v1534, 7
    %v1713 = vmul.f32 %v1708, %v1711
    %v1714 = vtanh.pop %v1697
    %v1715 = vmul.f32 %v1707, %v1714
    %v1716 = vadd.f32 %v1713, %v1715
    %v1717 = vtanh.pop %v1716
    %v1718 = vmul.f32 %v1709, %v1717
    %v1719 = vld [vmem:[#allocation2 + $0x2e0] ss:$0 sm:$0xff]
    %v1720 = vld [vmem:[#allocation2 + $0x300] ss:$0 sm:$0xff]
    %v1721 = vmul.f32 %v1718, %v1719
    %vm1722 = vcmask 1047559
    %v1723 = vsel %vm1722, %v1721, 0.0
    %1724 = vadd.xlane.f32.xlu0 %v1723
    %v1725 = vpop.xlane.xlu0 %1724
    %v1726 = vadd.f32 %v1725, %v1720
    %v1727 = vmul.f32 %v1726, 0.5
    %v1728 = vtanh.pop %v1727
    %v1729 = vmul.f32 %v1728, 0.5
    %v1730 = vadd.f32 %v1729, 0.5
    %vm1731 = vcmask 7175
    %1732 = vst.msk [vmem:[#allocation5 - $0x7] sm:$0x80] %vm1731, %v1730
    // Predicated region
    $region14: #{multimodal_lstm_forward.1} parent=1 // pred_check
      _
    $region15: #{multimodal_lstm_forward.1} parent=1 // pred_check_branch
      %1734 = sbr.rel (0) target = $region17
    $region16: #{multimodal_lstm_forward.1} parent=1 // pred_region
      %s1736 = ssub.s32 16, 16
      %1737 = vsyncadd [#allocation4], %s1736
      %s1739 = sshll.u32 [#allocation5], 4
      %s1740 = int_to_ptr.vmem [resolvable:$true] %s1739
      %1742 = dma.vmem_to_hbm [thread:$0]  %s1740, 16, %s2, [#allocation4]
    $region17: #{multimodal_lstm_forward.1} parent=1 // pred_fallthru
      _
    // Predicated region
    $region18: #{multimodal_lstm_forward.1} parent=1 // pred_check
      _
    $region19: #{multimodal_lstm_forward.1} parent=1 // pred_check_branch
      %1744 = sbr.rel (0) target = $region21
    $region20: #{multimodal_lstm_forward.1} parent=1 // pred_region
      %1745 = dma.done [#allocation4], 16
    $region21: #{multimodal_lstm_forward.1} parent=1 // pred_fallthru
      _
    %1746 = vsyncpa [#allocation3], 1
    %1747 = vsyncpa [#allocation4], 1

</llo_original>
